<compile_context>
chip_gen: v7x
topology: tpu7x:2x2x1
jax: 0.10.0
libtpu: 0.0.40
codegen_flags: <defaults>
</compile_context>

<pallas_src>
import functools

import jax
import jax.numpy as jnp
from jax.experimental import pallas as pl
from jax.experimental.pallas import tpu as pltpu


# ----------------------------- kernel body -----------------------------

def _conv1x1_bn_act_kernel(x_ref, w_ref, b_ref, o_ref, *, apply_act, compute_dtype):
    """Fused 1x1x1 Conv3d (BN folded into weight/bias) + ReLU.

    x_ref : (tB, H, W, cin)   input tile (tB = fused batch*depth rows)
    w_ref : (cin, cout)       conv weight with BN scale folded in
    b_ref : (1, cout)         folded BN bias
    o_ref : (tB, H, W, cout)  conv output tile (NO replication here; see wrapper)
    """
    tB, H, W, cin = x_ref.shape
    cout = w_ref.shape[-1]

    # One MXU matmul per tile: (tB*H*W, cin) @ (cin, cout).
    x = x_ref[...].reshape(tB * H * W, cin).astype(compute_dtype)
    w = w_ref[...].astype(compute_dtype)
    z = jnp.dot(x, w, preferred_element_type=jnp.float32)

    # f32 epilogue (bias + ReLU), then cast to the activation dtype.
    z = z + b_ref[...].astype(jnp.float32)
    if apply_act:
        z = jnp.maximum(z, 0.0)
    o_ref[...] = z.reshape(tB, H, W, cout).astype(o_ref.dtype)


# ----------------------------- sizing helpers -----------------------------

def _vmem_capacity_bytes():
    """Generation-aware VMEM capacity (v5e/v6e: 128 MiB, v7x: 64 MiB)."""
    try:
        info = pltpu.get_tpu_info()
        cap = int(getattr(info, "vmem_capacity_bytes", 0) or 0)
        if cap > 0:
            return cap
    except Exception:
        pass
    return 64 << 20  # conservative fallback (v7x per-core)


def _pick_rows_per_step(n_rows, bytes_per_row, budget_bytes, *, min_steps=8):
    """Rows per grid step: as big as the budget allows, but keep >= min_steps
    grid steps (pipeline overlap; megacore sharding on v7x).  Non-divisor tile
    sizes are fine because the grid uses cdiv + masked edge blocks."""
    rows = max(1, int(budget_bytes) // max(int(bytes_per_row), 1))
    rows = min(rows, n_rows)
    if n_rows >= min_steps:
        rows = min(rows, pl.cdiv(n_rows, min_steps))
    return max(1, rows)


def _vmem_limit_bytes(in_tile, out_tile, param_bytes, cap):
    # 2x for double-buffered in/out tiles + params + headroom; never above ~55%
    # of physical VMEM so the compiler keeps scratch headroom on 64 MiB parts.
    need = 2 * (in_tile + out_tile) + param_bytes + (4 << 20)
    return int(min(int(cap * 0.55), max(need, 16 << 20)))


# ----------------------------- pallas_call wrapper -----------------------------

def _conv1x1_bn_act(x_ndhwc, w_folded, bias, *, apply_act=True,
                    compute_dtype=jnp.bfloat16, out_dtype=None):
    """relu((x @ w_folded) + bias) on channels-last input.

    x_ndhwc : (N, D, H, W, Cin)
    returns : (N, D, H, W, Cout) in `out_dtype` (defaults to x's dtype)
    """
    N, D, H, W, cin = x_ndhwc.shape
    cout = w_folded.shape[-1]
    out_dtype = x_ndhwc.dtype if out_dtype is None else out_dtype

    B = N * D                                   # fold batch & depth: many grid steps
    xf = x_ndhwc.reshape(B, H, W, cin)

    cap = _vmem_capacity_bytes()
    budget = cap // 8                            # ~16 MiB on 128 MiB parts, ~8 MiB on v7x
    row_in_bytes = H * W * cin * x_ndhwc.dtype.itemsize
    row_out_bytes = H * W * cout * jnp.dtype(out_dtype).itemsize
    tB = _pick_rows_per_step(B, row_in_bytes + row_out_bytes, budget, min_steps=8)
    grid = (pl.cdiv(B, tB),)

    in_tile = tB * row_in_bytes
    out_tile = tB * row_out_bytes
    param_bytes = (cin + 1) * cout * 4

    kern = functools.partial(_conv1x1_bn_act_kernel,
                             apply_act=apply_act, compute_dtype=compute_dtype)

    y = pl.pallas_call(
        kern,
        out_shape=jax.ShapeDtypeStruct((B, H, W, cout), out_dtype),
        grid_spec=pltpu.PrefetchScalarGridSpec(
            num_scalar_prefetch=0,
            grid=grid,
            in_specs=[
                pl.BlockSpec((tB, H, W, cin), lambda b: (b, 0, 0, 0)),
                pl.BlockSpec((cin, cout), lambda b: (0, 0)),
                pl.BlockSpec((1, cout), lambda b: (0, 0)),
            ],
            out_specs=pl.BlockSpec((tB, H, W, cout), lambda b: (b, 0, 0, 0)),
        ),
        compiler_params=pltpu.CompilerParams(
            dimension_semantics=("parallel",),
            vmem_limit_bytes=_vmem_limit_bytes(in_tile, out_tile, param_bytes, cap)),
    )(xf, w_folded, bias.reshape(1, cout))
    return y.reshape(N, D, H, W, cout)


# ----------------------------- upsample (fused XLA broadcast) -----------------------------

def _upsample_nearest_ncdhw_from_ndhwc(x_ndhwc, s):
    """(N, D, H, W, C) -> (N, C, s*D, s*H, s*W).  Transpose + s^3 replication are
    one fused XLA broadcast: reads the 1x conv output, writes the s^3 result."""
    N, D, H, W, C = x_ndhwc.shape
    t = jnp.transpose(x_ndhwc, (0, 4, 1, 2, 3))                 # (N, C, D, H, W)
    t = jnp.broadcast_to(t[:, :, :, None, :, None, :, None],
                         (N, C, D, s, H, s, W, s))
    return t.reshape(N, C, s * D, s * H, s * W)


def _upsample_nearest_ncdhw(x_ncdhw, s):
    """NCDHW nearest upsample as one fused broadcast+reshape (read 1x, write s^3 x)."""
    N, C, D, H, W = x_ncdhw.shape
    t = jnp.broadcast_to(x_ncdhw[:, :, :, None, :, None, :, None],
                         (N, C, D, s, H, s, W, s))
    return t.reshape(N, C, s * D, s * H, s * W)


# ----------------------------- module: params + forward -----------------------------

def fold_batchnorm(params, eps=1e-5):
    """Fold eval-mode BatchNorm3d into the 1x1x1 conv weight and a bias.

    conv_w : (Cin, Cout) (1x1x1 kernel collapsed), BN params: (Cout,).
    """
    inv = params["bn_gamma"] * jax.lax.rsqrt(params["bn_var"] + eps)
    w_folded = params["conv_w"] * inv[None, :]                  # (cin, cout)
    bias = params["bn_beta"] - params["bn_mean"] * inv          # (cout,)
    return w_folded, bias


def upsampling_block_forward(x_ncdhw, params=None, *, stride=2,
                             compute_dtype=jnp.bfloat16):
    """UpsamplingBlock.forward.  Input/output use PyTorch NCDHW convention.

    params is None -> block built without in/out channels: nearest upsample only.
    params given   -> ConvBlock(k=1): Conv3d(bias=False) + BatchNorm3d(eval) + ReLU,
                      then nearest upsample by `stride`.
    """
    s = int(stride)
    if params is not None:
        x = jnp.transpose(x_ncdhw, (0, 2, 3, 4, 1))             # NCDHW -> NDHWC (cheap: Cin-sized)
        w_folded, bias = fold_batchnorm(params, eps=params.get("bn_eps", 1e-5))
        y = _conv1x1_bn_act(x, w_folded, bias,
                            compute_dtype=compute_dtype, out_dtype=x_ncdhw.dtype)
        return _upsample_nearest_ncdhw_from_ndhwc(y, s)
    # TODO(synk): conv-less branch is pure nearest replication (no compute); per the
    # perf review it is a single fused XLA broadcast+reshape (read 1x, write s^3 x)
    # instead of a Pallas kernel that would only add HBM traffic.
    return _upsample_nearest_ncdhw(x_ncdhw, s)


def upsampling_block_reference(x_ncdhw, params=None, *, stride=2, mxu_dtype=None):
    """Pure-JAX reference mirroring the PyTorch forward.

    mxu_dtype=None      -> exact f32 math (PyTorch eval-mode semantics).
    mxu_dtype=bfloat16  -> inputs rounded to bf16 before the matmul, f32 accumulate
                           (mirrors the kernel's native MXU path for tight checks).
    """
    x = jnp.transpose(x_ncdhw, (0, 2, 3, 4, 1)).astype(jnp.float32)
    if params is not None:
        w_folded, bias = fold_batchnorm(params, eps=params.get("bn_eps", 1e-5))
        xm = x if mxu_dtype is None else x.astype(mxu_dtype)
        wm = w_folded if mxu_dtype is None else w_folded.astype(mxu_dtype)
        z = jnp.einsum("ndhwc,co->ndhwo", xm, wm,
                       preferred_element_type=jnp.float32,
                       precision=jax.lax.Precision.HIGHEST)
        x = jnp.maximum(z + bias, 0.0)
    s = int(stride)
    x = jnp.repeat(jnp.repeat(jnp.repeat(x, s, axis=1), s, axis=2), s, axis=3)
    return jnp.transpose(x, (0, 4, 1, 2, 3))


# ----------------------------- demo -----------------------------

if __name__ == "__main__":
    N, Cin, Cout = 2, 4, 128     # Cout multiple of 128 -> fully lane-dense stores
    D = H = W = 16
    stride = 2

    key = jax.random.PRNGKey(0)
    kx, kw, kg, kb, km, kv = jax.random.split(key, 6)
    x = jax.random.normal(kx, (N, Cin, D, H, W), jnp.float32)          # NCDHW
    params = {
        "conv_w": 0.1 * jax.random.normal(kw, (Cin, Cout), jnp.float32),
        "bn_gamma": 1.0 + 0.1 * jax.random.normal(kg, (Cout,), jnp.float32),
        "bn_beta": 0.1 * jax.random.normal(kb, (Cout,), jnp.float32),
        "bn_mean": 0.1 * jax.random.normal(km, (Cout,), jnp.float32),
        "bn_var": 1.0 + 0.1 * jnp.abs(jax.random.normal(kv, (Cout,), jnp.float32)),
        "bn_eps": 1e-5,
    }

    # path 1: ConvBlock(k=1) + nearest x2 upsample (in/out channels given)
    out = jax.block_until_ready(upsampling_block_forward(x, params, stride=stride))
    assert out.shape == (N, Cout, stride * D, stride * H, stride * W), out.shape
    assert bool(jnp.all(jnp.isfinite(out)))

    # tight check vs a reference that mirrors the kernel's bf16-input MXU path
    ref_mxu = upsampling_block_reference(x, params, stride=stride,
                                         mxu_dtype=jnp.bfloat16)
    assert bool(jnp.allclose(out, ref_mxu, rtol=1e-5, atol=1e-5)), \
        float(jnp.max(jnp.abs(out - ref_mxu)))

    # sanity check vs the exact f32 PyTorch-semantics reference
    ref = upsampling_block_reference(x, params, stride=stride)
    assert bool(jnp.allclose(out, ref, rtol=5e-2, atol=2e-2)), \
        float(jnp.max(jnp.abs(out - ref)))

    # path 2: UpsamplingBlock built without channels -> nearest upsample only
    out2 = jax.block_until_ready(upsampling_block_forward(x, None, stride=stride))
    ref2 = upsampling_block_reference(x, None, stride=stride)
    assert out2.shape == (N, Cin, stride * D, stride * H, stride * W), out2.shape
    assert bool(jnp.array_equal(out2, ref2))

    print("KERNEL_OK")
</pallas_src>

<mosaic_0001>
module attributes {stable_mosaic.version = 11 : i64} {
  func.func @_conv1x1_bn_act_kernel(%arg0: i32, %arg1: memref<4x16x16x4xf32, #tpu.memory_space<vmem>>, %arg2: memref<4x128xf32, #tpu.memory_space<vmem>>, %arg3: memref<1x128xf32, #tpu.memory_space<vmem>>, %arg4: memref<4x16x16x128xf32, #tpu.memory_space<vmem>>) attributes {dimension_semantics = [#tpu.dimension_semantics<parallel>], iteration_bounds = array<i64: 8>, scalar_prefetch = 0 : i64, scratch_operands = 0 : i64, tpu.core_type = #tpu.core_type<tc>, window_params = [{transform_indices = @transform_0, window_bounds = array<i64: 4, 16, 16, 4>}, {pipeline_mode = #tpu.pipeline_mode<synchronous>, transform_indices = @transform_1, window_bounds = array<i64: 4, 128>}, {pipeline_mode = #tpu.pipeline_mode<synchronous>, transform_indices = @transform_2, window_bounds = array<i64: 1, 128>}, {transform_indices = @transform_3, window_bounds = array<i64: 4, 16, 16, 128>}]} {
    %c0 = arith.constant 0 : index
    %c0_0 = arith.constant 0 : index
    %c0_1 = arith.constant 0 : index
    %c0_2 = arith.constant 0 : index
    %0 = vector.load %arg1[%c0, %c0_0, %c0_1, %c0_2] : memref<4x16x16x4xf32, #tpu.memory_space<vmem>>, vector<4x16x16x4xf32>
    %1 = vector.shape_cast %0 : vector<4x16x16x4xf32> to vector<1024x4xf32>
    %2 = arith.truncf %1 : vector<1024x4xf32> to vector<1024x4xbf16>
    %c0_3 = arith.constant 0 : index
    %c0_4 = arith.constant 0 : index
    %3 = vector.load %arg2[%c0_3, %c0_4] : memref<4x128xf32, #tpu.memory_space<vmem>>, vector<4x128xf32>
    %4 = arith.truncf %3 : vector<4x128xf32> to vector<4x128xbf16>
    %cst = arith.constant dense<0.000000e+00> : vector<1024x128xf32>
    %5 = tpu.matmul %2, %4, %cst {dimension_numbers = #tpu.dot_dimension_numbers<[1], [0], [0], [1], [0, 0, 1, 1], [], []>} : vector<1024x4xbf16>, vector<4x128xbf16>, vector<1024x128xf32> -> vector<1024x128xf32>
    %c0_5 = arith.constant 0 : index
    %c0_6 = arith.constant 0 : index
    %6 = vector.load %arg3[%c0_5, %c0_6] : memref<1x128xf32, #tpu.memory_space<vmem>>, vector<1x128xf32>
    %7 = vector.broadcast %6 : vector<1x128xf32> to vector<1024x128xf32>
    %8 = arith.addf %5, %7 : vector<1024x128xf32>
    %cst_7 = arith.constant 0.000000e+00 : f32
    %9 = vector.broadcast %cst_7 : f32 to vector<1024x128xf32>
    %10 = arith.maximumf %8, %9 : vector<1024x128xf32>
    %11 = vector.shape_cast %10 : vector<1024x128xf32> to vector<4x16x16x128xf32>
    %c0_8 = arith.constant 0 : index
    %c0_9 = arith.constant 0 : index
    %c0_10 = arith.constant 0 : index
    %c0_11 = arith.constant 0 : index
    %12 = vector.load %arg4[%c0_8, %c0_9, %c0_10, %c0_11] : memref<4x16x16x128xf32, #tpu.memory_space<vmem>>, vector<4x16x16x128xf32>
    tpu.vector_store %arg4[%c0_8, %c0_9, %c0_10, %c0_11], %11 {strides = array<i32>} : memref<4x16x16x128xf32, #tpu.memory_space<vmem>>, vector<4x16x16x128xf32>,
    return
  }
  func.func @transform_0(%arg0: i32) -> (i32, i32, i32, i32) {
    %c0_i32 = arith.constant 0 : i32
    %c0_i32_0 = arith.constant 0 : i32
    %c0_i32_1 = arith.constant 0 : i32
    %c0_i32_2 = arith.constant 0 : i32
    return %arg0, %c0_i32, %c0_i32_0, %c0_i32_1 : i32, i32, i32, i32
  }
  func.func @transform_1(%arg0: i32) -> (i32, i32) {
    %c0_i32 = arith.constant 0 : i32
    %c0_i32_0 = arith.constant 0 : i32
    %c0_i32_1 = arith.constant 0 : i32
    return %c0_i32, %c0_i32_0 : i32, i32
  }
  func.func @transform_2(%arg0: i32) -> (i32, i32) {
    %c0_i32 = arith.constant 0 : i32
    %c0_i32_0 = arith.constant 0 : i32
    %c0_i32_1 = arith.constant 0 : i32
    return %c0_i32, %c0_i32_0 : i32, i32
  }
  func.func @transform_3(%arg0: i32) -> (i32, i32, i32, i32) {
    %c0_i32 = arith.constant 0 : i32
    %c0_i32_0 = arith.constant 0 : i32
    %c0_i32_1 = arith.constant 0 : i32
    %c0_i32_2 = arith.constant 0 : i32
    return %arg0, %c0_i32, %c0_i32_0, %c0_i32_1 : i32, i32, i32, i32
  }
}

</mosaic_0001>

<llo_original>
// kernel: tpu_custom_call.1
$region0: #{tpu_custom_call.1}
  #allocation0 [shape = 'u32[]', space=smem, size = 0x4, offset = 0x4, fixed_abs, tag = 'smem constant byte address 0x4 - core index']
  #allocation1 [shape = 'u32[144,128]{1,0:T(1,128)}', space=vmem, size = 0x12000, scoped, tag = 'internal scratch']
  %s0 = inlined_call_operand.vmem [shape: f32[32,16,16,4], index: 0, kind: input, shape index: {}]
  %s1 = inlined_call_operand.vmem [shape: f32[4,128], index: 1, kind: input, shape index: {}]
  %s2 = inlined_call_operand.vmem [shape: f32[1,128], index: 2, kind: input, shape index: {}]
  %s3 = inlined_call_operand.hbm [shape: f32[32,16,16,128], index: 3, kind: output, shape index: {}]
  %s4 = sld [smem:[#allocation0]]
  $region45: #{tpu_custom_call.1} parent=0
    _
  %s6 = ssub.s32 1, %s4
  %s7 = scalar_select 0, %s6, %s4
  $region1: #{tpu_custom_call.1} parent=0
    #allocation2 [shape = 'u8[1048576]{0}', space=vmem, size = 0x100000, scoped, tag = 'output window, operand 0']
    #allocation3 [shape = 's32[2]{0}', space=sflag, size = 0x8, scoped, tag = 'scoped memory for tpu_custom_call.1']
    %8 = vsyncpa [#allocation3], 0
    %s9 = scalar_lea.sflag [#allocation3], 1
    %10 = vsyncpa %s9, 0
    loop: start=0, step=1, limit=10
    $region2: #{tpu_custom_call.1} parent=1 // loop_pre_header
      _
    $region3: #{tpu_custom_call.1} parent=1 // loop_header
      %s12 = sphi 0, %s16
      %p13 = scmp.ge.s32.totalorder %s12, 10
      %s22 = sphi 0, %s24
      %s25 = sphi 0, %s22
      %s26 = sphi 0, %s25
      %s42 = sphi 0, %s26
      %s46 = sphi 0, %s46
      %s48 = sphi 0, %s46
      %s49 = sphi 0, %s48
      %s63 = sphi 0, %s49
      %s67 = sphi 0, %s67
      %s69 = sphi 0, %s67
      %s70 = sphi 0, %s69
      %s84 = sphi 0, %s70
      %s90 = sphi 0, %s92
      %s93 = sphi 0, %s90
      %s94 = sphi 0, %s93
      %s110 = sphi 0, %s94
    $region4: #{tpu_custom_call.1} parent=1 // loop_header_branch
      %15 = sbr.rel (%p13) target = $region8
    $region5: #{tpu_custom_call.1} parent=1 // loop_body
      %s17 = ssub.s32 %s12, 1
      %s18 = ssub.s32 %s12, 2
      %s19 = sadd.s32 %s12, 1
      %s20 = ssub.s32 %s12, %s19
      %p21 = scmp.eq.s32.totalorder %s20, 0
      %s23 = sadd.s32 %s22, 1
      %s24 = scalar_select %p21, %s22, %s23
      %p27 = pneg %p21
      %p28 = scmp.eq.s32.totalorder %s12, 7
      %p29 = por %p27, %p28
      %p30 = scmp.ne.s32.totalorder %s22, %s25
      %p31 = scmp.eq.s32.totalorder %s12, 0
      %p32 = por %p30, %p31
      %p33 = scmp.ne.s32.totalorder %s22, %s25
      %p34 = scmp.eq.s32.totalorder %s17, 7
      %p35 = por %p33, %p34
      %p36 = scmp.ne.s32.totalorder %s25, %s26
      %p37 = scmp.eq.s32.totalorder %s17, 0
      %p38 = por %p36, %p37
      %p39 = scmp.ne.s32.totalorder %s25, %s26
      %p40 = scmp.eq.s32.totalorder %s18, 7
      %p41 = por %p39, %p40
      %p43 = scmp.ne.s32.totalorder %s26, %s42
      %p44 = scmp.eq.s32.totalorder %s18, 0
      %p45 = por %p43, %p44
      %s47 = sadd.s32 %s46, 1
      %p50 = scmp.eq.s32.totalorder %s12, 7
      %p51 = scmp.ne.s32.totalorder %s46, %s48
      %p52 = scmp.eq.s32.totalorder %s12, 0
      %p53 = por %p51, %p52
      %p54 = scmp.ne.s32.totalorder %s46, %s48
      %p55 = scmp.eq.s32.totalorder %s17, 7
      %p56 = por %p54, %p55
      %p57 = scmp.ne.s32.totalorder %s48, %s49
      %p58 = scmp.eq.s32.totalorder %s17, 0
      %p59 = por %p57, %p58
      %p60 = scmp.ne.s32.totalorder %s48, %s49
      %p61 = scmp.eq.s32.totalorder %s18, 7
      %p62 = por %p60, %p61
      %p64 = scmp.ne.s32.totalorder %s49, %s63
      %p65 = scmp.eq.s32.totalorder %s18, 0
      %p66 = por %p64, %p65
      %s68 = sadd.s32 %s67, 1
      %p71 = scmp.eq.s32.totalorder %s12, 7
      %p72 = scmp.ne.s32.totalorder %s67, %s69
      %p73 = scmp.eq.s32.totalorder %s12, 0
      %p74 = por %p72, %p73
      %p75 = scmp.ne.s32.totalorder %s67, %s69
      %p76 = scmp.eq.s32.totalorder %s17, 7
      %p77 = por %p75, %p76
      %p78 = scmp.ne.s32.totalorder %s69, %s70
      %p79 = scmp.eq.s32.totalorder %s17, 0
      %p80 = por %p78, %p79
      %p81 = scmp.ne.s32.totalorder %s69, %s70
      %p82 = scmp.eq.s32.totalorder %s18, 7
      %p83 = por %p81, %p82
      %p85 = scmp.ne.s32.totalorder %s70, %s84
      %p86 = scmp.eq.s32.totalorder %s18, 0
      %p87 = por %p85, %p86
      %s88 = ssub.s32 %s12, %s19
      %p89 = scmp.eq.s32.totalorder %s88, 0
      %s91 = sadd.s32 %s90, 1
      %s92 = scalar_select %p89, %s90, %s91
      %p95 = pneg %p89
      %p96 = scmp.eq.s32.totalorder %s12, 7
      %p97 = por %p95, %p96
      %p98 = scmp.ne.s32.totalorder %s90, %s93
      %p99 = scmp.eq.s32.totalorder %s12, 0
      %p100 = por %p98, %p99
      %p101 = scmp.ne.s32.totalorder %s90, %s93
      %p102 = scmp.eq.s32.totalorder %s17, 7
      %p103 = por %p101, %p102
      %p104 = scmp.ne.s32.totalorder %s93, %s94
      %p105 = scmp.eq.s32.totalorder %s17, 0
      %p106 = por %p104, %p105
      %p107 = scmp.ne.s32.totalorder %s93, %s94
      %p108 = scmp.eq.s32.totalorder %s18, 7
      %p109 = por %p107, %p108
      %p111 = scmp.ne.s32.totalorder %s94, %s110
      %p112 = scmp.eq.s32.totalorder %s18, 0
      %p113 = por %p111, %p112
      %p114 = scmp.le.s32.totalorder 1, %s12
      %p115 = scmp.lt.s32.totalorder %s12, 9
      %p116 = pnand %p114, %p115
      %p117 = pneg %p116
      // Predicated region
      $region9: #{tpu_custom_call.1} parent=5 // pred_check
        _
      $region10: #{tpu_custom_call.1} parent=5 // pred_check_branch
        %119 = sbr.rel (%p116) target = $region12
      $region11: #{tpu_custom_call.1} parent=5 // pred_region
        %s120 = ssub.s32 %s12, 1
        // Predicated region
        $region13: #{tpu_custom_call.1} parent=11 // pred_check
          %p121 = pneg %p59
        $region14: #{tpu_custom_call.1} parent=11 // pred_check_branch
          %123 = sbr.rel (%p121) target = $region16
        $region15: #{tpu_custom_call.1} parent=11 // pred_region
          _
        $region16: #{tpu_custom_call.1} parent=11 // pred_fallthru
          _
        // Predicated region
        $region17: #{tpu_custom_call.1} parent=11 // pred_check
          %p124 = pneg %p80
        $region18: #{tpu_custom_call.1} parent=11 // pred_check_branch
          %126 = sbr.rel (%p124) target = $region20
        $region19: #{tpu_custom_call.1} parent=11 // pred_region
          _
        $region20: #{tpu_custom_call.1} parent=11 // pred_fallthru
          _
      $region12: #{tpu_custom_call.1} parent=5 // pred_fallthru
        _
      %p127 = scmp.lt.s32.totalorder %s12, 8
      // Predicated region
      $region21: #{tpu_custom_call.1} parent=5 // pred_check
        %p128 = pneg %p127
      $region22: #{tpu_custom_call.1} parent=5 // pred_check_branch
        %130 = sbr.rel (%p128) target = $region24
      $region23: #{tpu_custom_call.1} parent=5 // pred_region
        // Predicated region
        $region25: #{tpu_custom_call.1} parent=23 // pred_check
          %p131 = pneg %p32
        $region26: #{tpu_custom_call.1} parent=23 // pred_check_branch
          %133 = sbr.rel (%p131) target = $region28
        $region27: #{tpu_custom_call.1} parent=23 // pred_region
          %s134 = smul.u32 4, %s12
          %p135 = scmp.lt.s32.totalorder %s134, 31
          %s136 = scalar_select %p135, %s134, 31
          %s137 = smul.addr %s136, 32
          %s138 = smul.addr %s137, 8
          %s139 = scalar_lea.vmem %s0, %s138
          %s140 = smul.u32 4, %s12
        $region28: #{tpu_custom_call.1} parent=23 // pred_fallthru
          _
      $region24: #{tpu_custom_call.1} parent=5 // pred_fallthru
        _
      %p141 = scmp.le.s32.totalorder 1, %s12
      %p142 = scmp.lt.s32.totalorder %s12, 9
      %p143 = pnand %p141, %p142
      %p144 = pneg %p143
      // Predicated region
      $region29: #{tpu_custom_call.1} parent=5 // pred_check
        _
      $region30: #{tpu_custom_call.1} parent=5 // pred_check_branch
        %146 = sbr.rel (%p143) target = $region32
      $region31: #{tpu_custom_call.1} parent=5 // pred_region
        %s147 = ssub.s32 %s12, 1
        %s148 = smul.u32 4, %s17
        %p149 = scmp.lt.s32.totalorder %s148, 31
        %s150 = scalar_select %p149, %s148, 31
        %s151 = smul.addr %s150, 32
        %s152 = smul.addr %s151, 8
        %s153 = scalar_lea.vmem %s0, %s152
        %p154 = pneg %p38
        %p155 = pneg %p35
        %p156 = pneg %p59
        %p157 = pneg %p56
        %p158 = pneg %p80
        %p159 = pneg %p77
        %p160 = pneg %p106
        %p161 = pneg %p103
        %s162 = sand.u32 %s93, 1
        %s163 = scalar_lea.sflag [#allocation3], %s162
        %s164 = sand.u32 %s93, 1
        %s165 = smul.addr %s164, 1024
        %s166 = scalar_lea.vmem [#allocation2], %s165
        %s167 = smul.u32 4, %s17
        %p168 = scmp.lt.s32.totalorder %s167, 31
        %s169 = scalar_select %p168, %s167, 31
        %s170 = smul.addr %s169, 32
        %s171 = smul.addr %s170, 8
        %s172 = scalar_lea.vmem %s0, %s171
        %s173 = smul.u32 4, %s17
        %s174 = smul.u32 4, %s17
        %v176 = vld [vmem:[%s172] sm:$0xff]
        %v177 = vld [vmem:[%s172 + $0x8] sm:$0xff]
        %v178 = vld [vmem:[%s172 + $0x10] sm:$0xff]
        %v179 = vld [vmem:[%s172 + $0x18] sm:$0xff]
        %v180 = vld [vmem:[%s172 + $0x20] sm:$0xff]
        %v181 = vld [vmem:[%s172 + $0x28] sm:$0xff]
        %v182 = vld [vmem:[%s172 + $0x30] sm:$0xff]
        %v183 = vld [vmem:[%s172 + $0x38] sm:$0xff]
        %v184 = vld [vmem:[%s172 + $0x40] sm:$0xff]
        %v185 = vld [vmem:[%s172 + $0x48] sm:$0xff]
        %v186 = vld [vmem:[%s172 + $0x50] sm:$0xff]
        %v187 = vld [vmem:[%s172 + $0x58] sm:$0xff]
        %v188 = vld [vmem:[%s172 + $0x60] sm:$0xff]
        %v189 = vld [vmem:[%s172 + $0x68] sm:$0xff]
        %v190 = vld [vmem:[%s172 + $0x70] sm:$0xff]
        %v191 = vld [vmem:[%s172 + $0x78] sm:$0xff]
        %v192 = vld [vmem:[%s172 + $0x80] sm:$0xff]
        %v193 = vld [vmem:[%s172 + $0x88] sm:$0xff]
        %v194 = vld [vmem:[%s172 + $0x90] sm:$0xff]
        %v195 = vld [vmem:[%s172 + $0x98] sm:$0xff]
        %v196 = vld [vmem:[%s172 + $0xa0] sm:$0xff]
        %v197 = vld [vmem:[%s172 + $0xa8] sm:$0xff]
        %v198 = vld [vmem:[%s172 + $0xb0] sm:$0xff]
        %v199 = vld [vmem:[%s172 + $0xb8] sm:$0xff]
        %v200 = vld [vmem:[%s172 + $0xc0] sm:$0xff]
        %v201 = vld [vmem:[%s172 + $0xc8] sm:$0xff]
        %v202 = vld [vmem:[%s172 + $0xd0] sm:$0xff]
        %v203 = vld [vmem:[%s172 + $0xd8] sm:$0xff]
        %v204 = vld [vmem:[%s172 + $0xe0] sm:$0xff]
        %v205 = vld [vmem:[%s172 + $0xe8] sm:$0xff]
        %v206 = vld [vmem:[%s172 + $0xf0] sm:$0xff]
        %v207 = vld [vmem:[%s172 + $0xf8] sm:$0xff]
        %v208 = vld [vmem:[%s172 + $0x100] sm:$0xff]
        %v209 = vld [vmem:[%s172 + $0x108] sm:$0xff]
        %v210 = vld [vmem:[%s172 + $0x110] sm:$0xff]
        %v211 = vld [vmem:[%s172 + $0x118] sm:$0xff]
        %v212 = vld [vmem:[%s172 + $0x120] sm:$0xff]
        %v213 = vld [vmem:[%s172 + $0x128] sm:$0xff]
        %v214 = vld [vmem:[%s172 + $0x130] sm:$0xff]
        %v215 = vld [vmem:[%s172 + $0x138] sm:$0xff]
        %v216 = vld [vmem:[%s172 + $0x140] sm:$0xff]
        %v217 = vld [vmem:[%s172 + $0x148] sm:$0xff]
        %v218 = vld [vmem:[%s172 + $0x150] sm:$0xff]
        %v219 = vld [vmem:[%s172 + $0x158] sm:$0xff]
        %v220 = vld [vmem:[%s172 + $0x160] sm:$0xff]
        %v221 = vld [vmem:[%s172 + $0x168] sm:$0xff]
        %v222 = vld [vmem:[%s172 + $0x170] sm:$0xff]
        %v223 = vld [vmem:[%s172 + $0x178] sm:$0xff]
        %v224 = vld [vmem:[%s172 + $0x180] sm:$0xff]
        %v225 = vld [vmem:[%s172 + $0x188] sm:$0xff]
        %v226 = vld [vmem:[%s172 + $0x190] sm:$0xff]
        %v227 = vld [vmem:[%s172 + $0x198] sm:$0xff]
        %v228 = vld [vmem:[%s172 + $0x1a0] sm:$0xff]
        %v229 = vld [vmem:[%s172 + $0x1a8] sm:$0xff]
        %v230 = vld [vmem:[%s172 + $0x1b0] sm:$0xff]
        %v231 = vld [vmem:[%s172 + $0x1b8] sm:$0xff]
        %v232 = vld [vmem:[%s172 + $0x1c0] sm:$0xff]
        %v233 = vld [vmem:[%s172 + $0x1c8] sm:$0xff]
        %v234 = vld [vmem:[%s172 + $0x1d0] sm:$0xff]
        %v235 = vld [vmem:[%s172 + $0x1d8] sm:$0xff]
        %v236 = vld [vmem:[%s172 + $0x1e0] sm:$0xff]
        %v237 = vld [vmem:[%s172 + $0x1e8] sm:$0xff]
        %v238 = vld [vmem:[%s172 + $0x1f0] sm:$0xff]
        %v239 = vld [vmem:[%s172 + $0x1f8] sm:$0xff]
        %v240 = vld [vmem:[%s172 + $0x200] sm:$0xff]
        %v241 = vld [vmem:[%s172 + $0x208] sm:$0xff]
        %v242 = vld [vmem:[%s172 + $0x210] sm:$0xff]
        %v243 = vld [vmem:[%s172 + $0x218] sm:$0xff]
        %v244 = vld [vmem:[%s172 + $0x220] sm:$0xff]
        %v245 = vld [vmem:[%s172 + $0x228] sm:$0xff]
        %v246 = vld [vmem:[%s172 + $0x230] sm:$0xff]
        %v247 = vld [vmem:[%s172 + $0x238] sm:$0xff]
        %v248 = vld [vmem:[%s172 + $0x240] sm:$0xff]
        %v249 = vld [vmem:[%s172 + $0x248] sm:$0xff]
        %v250 = vld [vmem:[%s172 + $0x250] sm:$0xff]
        %v251 = vld [vmem:[%s172 + $0x258] sm:$0xff]
        %v252 = vld [vmem:[%s172 + $0x260] sm:$0xff]
        %v253 = vld [vmem:[%s172 + $0x268] sm:$0xff]
        %v254 = vld [vmem:[%s172 + $0x270] sm:$0xff]
        %v255 = vld [vmem:[%s172 + $0x278] sm:$0xff]
        %v256 = vld [vmem:[%s172 + $0x280] sm:$0xff]
        %v257 = vld [vmem:[%s172 + $0x288] sm:$0xff]
        %v258 = vld [vmem:[%s172 + $0x290] sm:$0xff]
        %v259 = vld [vmem:[%s172 + $0x298] sm:$0xff]
        %v260 = vld [vmem:[%s172 + $0x2a0] sm:$0xff]
        %v261 = vld [vmem:[%s172 + $0x2a8] sm:$0xff]
        %v262 = vld [vmem:[%s172 + $0x2b0] sm:$0xff]
        %v263 = vld [vmem:[%s172 + $0x2b8] sm:$0xff]
        %v264 = vld [vmem:[%s172 + $0x2c0] sm:$0xff]
        %v265 = vld [vmem:[%s172 + $0x2c8] sm:$0xff]
        %v266 = vld [vmem:[%s172 + $0x2d0] sm:$0xff]
        %v267 = vld [vmem:[%s172 + $0x2d8] sm:$0xff]
        %v268 = vld [vmem:[%s172 + $0x2e0] sm:$0xff]
        %v269 = vld [vmem:[%s172 + $0x2e8] sm:$0xff]
        %v270 = vld [vmem:[%s172 + $0x2f0] sm:$0xff]
        %v271 = vld [vmem:[%s172 + $0x2f8] sm:$0xff]
        %v272 = vld [vmem:[%s172 + $0x300] sm:$0xff]
        %v273 = vld [vmem:[%s172 + $0x308] sm:$0xff]
        %v274 = vld [vmem:[%s172 + $0x310] sm:$0xff]
        %v275 = vld [vmem:[%s172 + $0x318] sm:$0xff]
        %v276 = vld [vmem:[%s172 + $0x320] sm:$0xff]
        %v277 = vld [vmem:[%s172 + $0x328] sm:$0xff]
        %v278 = vld [vmem:[%s172 + $0x330] sm:$0xff]
        %v279 = vld [vmem:[%s172 + $0x338] sm:$0xff]
        %v280 = vld [vmem:[%s172 + $0x340] sm:$0xff]
        %v281 = vld [vmem:[%s172 + $0x348] sm:$0xff]
        %v282 = vld [vmem:[%s172 + $0x350] sm:$0xff]
        %v283 = vld [vmem:[%s172 + $0x358] sm:$0xff]
        %v284 = vld [vmem:[%s172 + $0x360] sm:$0xff]
        %v285 = vld [vmem:[%s172 + $0x368] sm:$0xff]
        %v286 = vld [vmem:[%s172 + $0x370] sm:$0xff]
        %v287 = vld [vmem:[%s172 + $0x378] sm:$0xff]
        %v288 = vld [vmem:[%s172 + $0x380] sm:$0xff]
        %v289 = vld [vmem:[%s172 + $0x388] sm:$0xff]
        %v290 = vld [vmem:[%s172 + $0x390] sm:$0xff]
        %v291 = vld [vmem:[%s172 + $0x398] sm:$0xff]
        %v292 = vld [vmem:[%s172 + $0x3a0] sm:$0xff]
        %v293 = vld [vmem:[%s172 + $0x3a8] sm:$0xff]
        %v294 = vld [vmem:[%s172 + $0x3b0] sm:$0xff]
        %v295 = vld [vmem:[%s172 + $0x3b8] sm:$0xff]
        %v296 = vld [vmem:[%s172 + $0x3c0] sm:$0xff]
        %v297 = vld [vmem:[%s172 + $0x3c8] sm:$0xff]
        %v298 = vld [vmem:[%s172 + $0x3d0] sm:$0xff]
        %v299 = vld [vmem:[%s172 + $0x3d8] sm:$0xff]
        %v300 = vld [vmem:[%s172 + $0x3e0] sm:$0xff]
        %v301 = vld [vmem:[%s172 + $0x3e8] sm:$0xff]
        %v302 = vld [vmem:[%s172 + $0x3f0] sm:$0xff]
        %v303 = vld [vmem:[%s172 + $0x3f8] sm:$0xff]
        %v304 = vpack.c.bf16 %v177, %v176
        %v305 = vpack.c.bf16 %v179, %v178
        %v306 = vpack.c.bf16 %v181, %v180
        %v307 = vpack.c.bf16 %v183, %v182
        %v308 = vpack.c.bf16 %v185, %v184
        %v309 = vpack.c.bf16 %v187, %v186
        %v310 = vpack.c.bf16 %v189, %v188
        %v311 = vpack.c.bf16 %v191, %v190
        %v312 = vpack.c.bf16 %v193, %v192
        %v313 = vpack.c.bf16 %v195, %v194
        %v314 = vpack.c.bf16 %v197, %v196
        %v315 = vpack.c.bf16 %v199, %v198
        %v316 = vpack.c.bf16 %v201, %v200
        %v317 = vpack.c.bf16 %v203, %v202
        %v318 = vpack.c.bf16 %v205, %v204
        %v319 = vpack.c.bf16 %v207, %v206
        %v320 = vpack.c.bf16 %v209, %v208
        %v321 = vpack.c.bf16 %v211, %v210
        %v322 = vpack.c.bf16 %v213, %v212
        %v323 = vpack.c.bf16 %v215, %v214
        %v324 = vpack.c.bf16 %v217, %v216
        %v325 = vpack.c.bf16 %v219, %v218
        %v326 = vpack.c.bf16 %v221, %v220
        %v327 = vpack.c.bf16 %v223, %v222
        %v328 = vpack.c.bf16 %v225, %v224
        %v329 = vpack.c.bf16 %v227, %v226
        %v330 = vpack.c.bf16 %v229, %v228
        %v331 = vpack.c.bf16 %v231, %v230
        %v332 = vpack.c.bf16 %v233, %v232
        %v333 = vpack.c.bf16 %v235, %v234
        %v334 = vpack.c.bf16 %v237, %v236
        %v335 = vpack.c.bf16 %v239, %v238
        %v336 = vpack.c.bf16 %v241, %v240
        %v337 = vpack.c.bf16 %v243, %v242
        %v338 = vpack.c.bf16 %v245, %v244
        %v339 = vpack.c.bf16 %v247, %v246
        %v340 = vpack.c.bf16 %v249, %v248
        %v341 = vpack.c.bf16 %v251, %v250
        %v342 = vpack.c.bf16 %v253, %v252
        %v343 = vpack.c.bf16 %v255, %v254
        %v344 = vpack.c.bf16 %v257, %v256
        %v345 = vpack.c.bf16 %v259, %v258
        %v346 = vpack.c.bf16 %v261, %v260
        %v347 = vpack.c.bf16 %v263, %v262
        %v348 = vpack.c.bf16 %v265, %v264
        %v349 = vpack.c.bf16 %v267, %v266
        %v350 = vpack.c.bf16 %v269, %v268
        %v351 = vpack.c.bf16 %v271, %v270
        %v352 = vpack.c.bf16 %v273, %v272
        %v353 = vpack.c.bf16 %v275, %v274
        %v354 = vpack.c.bf16 %v277, %v276
        %v355 = vpack.c.bf16 %v279, %v278
        %v356 = vpack.c.bf16 %v281, %v280
        %v357 = vpack.c.bf16 %v283, %v282
        %v358 = vpack.c.bf16 %v285, %v284
        %v359 = vpack.c.bf16 %v287, %v286
        %v360 = vpack.c.bf16 %v289, %v288
        %v361 = vpack.c.bf16 %v291, %v290
        %v362 = vpack.c.bf16 %v293, %v292
        %v363 = vpack.c.bf16 %v295, %v294
        %v364 = vpack.c.bf16 %v297, %v296
        %v365 = vpack.c.bf16 %v299, %v298
        %v366 = vpack.c.bf16 %v301, %v300
        %v367 = vpack.c.bf16 %v303, %v302
        %v368 = vld [vmem:[%s1] sm:$0xf]
        %v369 = vpack.c.bf16 %v368, %v368
        %v370 = vld [vmem:[%s2] sm:$0x1]
        %v372 = vlaneseq
        %v373 = vshrl.u32 %v372, 7
        %v374 = vsub.s32 0, %v373
        %v375 = vrot.slane %v370, %v374
        %vm377 = vcmask 31744
        %v379 = vsel %vm377, %v304, 0
        %v382 = vsel %vm377, %v305, 0
        %v385 = vsel %vm377, %v306, 0
        %v388 = vsel %vm377, %v307, 0
        %v391 = vsel %vm377, %v308, 0
        %v394 = vsel %vm377, %v309, 0
        %v397 = vsel %vm377, %v310, 0
        %v400 = vsel %vm377, %v311, 0
        %v403 = vsel %vm377, %v312, 0
        %v406 = vsel %vm377, %v313, 0
        %v409 = vsel %vm377, %v314, 0
        %v412 = vsel %vm377, %v315, 0
        %v415 = vsel %vm377, %v316, 0
        %v418 = vsel %vm377, %v317, 0
        %v421 = vsel %vm377, %v318, 0
        %v424 = vsel %vm377, %v319, 0
        %v427 = vsel %vm377, %v320, 0
        %v430 = vsel %vm377, %v321, 0
        %v433 = vsel %vm377, %v322, 0
        %v436 = vsel %vm377, %v323, 0
        %v439 = vsel %vm377, %v324, 0
        %v442 = vsel %vm377, %v325, 0
        %v445 = vsel %vm377, %v326, 0
        %v448 = vsel %vm377, %v327, 0
        %v451 = vsel %vm377, %v328, 0
        %v454 = vsel %vm377, %v329, 0
        %v457 = vsel %vm377, %v330, 0
        %v460 = vsel %vm377, %v331, 0
        %v463 = vsel %vm377, %v332, 0
        %v466 = vsel %vm377, %v333, 0
        %v469 = vsel %vm377, %v334, 0
        %v472 = vsel %vm377, %v335, 0
        %v475 = vsel %vm377, %v336, 0
        %v478 = vsel %vm377, %v337, 0
        %v481 = vsel %vm377, %v338, 0
        %v484 = vsel %vm377, %v339, 0
        %v487 = vsel %vm377, %v340, 0
        %v490 = vsel %vm377, %v341, 0
        %v493 = vsel %vm377, %v342, 0
        %v496 = vsel %vm377, %v343, 0
        %v499 = vsel %vm377, %v344, 0
        %v502 = vsel %vm377, %v345, 0
        %v505 = vsel %vm377, %v346, 0
        %v508 = vsel %vm377, %v347, 0
        %v511 = vsel %vm377, %v348, 0
        %v514 = vsel %vm377, %v349, 0
        %v517 = vsel %vm377, %v350, 0
        %v520 = vsel %vm377, %v351, 0
        %v523 = vsel %vm377, %v352, 0
        %v526 = vsel %vm377, %v353, 0
        %v529 = vsel %vm377, %v354, 0
        %v532 = vsel %vm377, %v355, 0
        %v535 = vsel %vm377, %v356, 0
        %v538 = vsel %vm377, %v357, 0
        %v541 = vsel %vm377, %v358, 0
        %v544 = vsel %vm377, %v359, 0
        %v547 = vsel %vm377, %v360, 0
        %v550 = vsel %vm377, %v361, 0
        %v553 = vsel %vm377, %v362, 0
        %v556 = vsel %vm377, %v363, 0
        %v559 = vsel %vm377, %v364, 0
        %v562 = vsel %vm377, %v365, 0
        %v565 = vsel %vm377, %v366, 0
        %v568 = vsel %vm377, %v367, 0
        %vm570 = vcmask 1041408
        %v572 = vsel %vm570, %v369, 0
        %574 = vmatprep.subr.bf16.mxu0 0
        %575 = vmatpush1.bf16.msra.mxu0 %v572
        %576 = vmatprep.subr.bf16.mxu0 0
        %577 = vmatpush1.bf16.msra.mxu0 0
        %578 = vmatprep.subr.bf16.mxu0 0
        %579 = vmatpush1.bf16.msra.mxu0 0
        %580 = vmatprep.subr.bf16.mxu0 0
        %581 = vmatpush1.bf16.msra.mxu0 0
        %582 = vmatprep.subr.bf16.mxu0 0
        %583 = vmatpush1.bf16.msra.mxu0 0
        %584 = vmatprep.subr.bf16.mxu0 0
        %585 = vmatpush1.bf16.msra.mxu0 0
        %586 = vmatprep.subr.bf16.mxu0 0
        %587 = vmatpush1.bf16.msra.mxu0 0
        %588 = vmatprep.subr.bf16.mxu0 0
        %589 = vmatpush1.bf16.msra.mxu0 0
        %590 = vmatprep.subr.bf16.mxu0 0
        %591 = vmatpush1.bf16.msra.mxu0 0
        %592 = vmatprep.subr.bf16.mxu0 0
        %593 = vmatpush1.bf16.msra.mxu0 0
        %594 = vmatprep.subr.bf16.mxu0 0
        %595 = vmatpush1.bf16.msra.mxu0 0
        %596 = vmatprep.subr.bf16.mxu0 0
        %597 = vmatpush1.bf16.msra.mxu0 0
        %598 = vmatprep.subr.bf16.mxu0 0
        %599 = vmatpush1.bf16.msra.mxu0 0
        %600 = vmatprep.subr.bf16.mxu0 0
        %601 = vmatpush1.bf16.msra.mxu0 0
        %602 = vmatprep.subr.bf16.mxu0 0
        %603 = vmatpush1.bf16.msra.mxu0 0
        %604 = vmatprep.subr.bf16.mxu0 0
        %605 = vmatpush1.bf16.msra.mxu0 0
        %606 = vmatprep.mubr.bf16.mxu0 0
        %607 = vmatmul.mubr.bf16.gmra.mrb[0].mxu0 %v379
        %v608 = vpop.f32.mrb[0].mxu0
        %v609 = vadd.f32 %v375, %v608
        %v610 = vpop.f32.mrb[0].mxu0
        %v611 = vpop.f32.mrb[0].mxu0
        %v612 = vadd.f32 %v375, %v611
        %v613 = vpop.f32.mrb[0].mxu0
        %614 = vmatprep.mubr.bf16.mxu0 0
        %615 = vmatmul.mubr.bf16.gmra.mrb[0].mxu0 %v382
        %v616 = vpop.f32.mrb[0].mxu0
        %v617 = vadd.f32 %v375, %v616
        %v618 = vpop.f32.mrb[0].mxu0
        %v619 = vpop.f32.mrb[0].mxu0
        %v620 = vadd.f32 %v375, %v619
        %v621 = vpop.f32.mrb[0].mxu0
        %622 = vmatprep.mubr.bf16.mxu0 0
        %623 = vmatmul.mubr.bf16.gmra.mrb[0].mxu0 %v385
        %v624 = vpop.f32.mrb[0].mxu0
        %v625 = vadd.f32 %v375, %v624
        %v626 = vpop.f32.mrb[0].mxu0
        %v627 = vpop.f32.mrb[0].mxu0
        %v628 = vadd.f32 %v375, %v627
        %v629 = vpop.f32.mrb[0].mxu0
        %630 = vmatprep.mubr.bf16.mxu0 0
        %631 = vmatmul.mubr.bf16.gmra.mrb[0].mxu0 %v388
        %v632 = vpop.f32.mrb[0].mxu0
        %v633 = vadd.f32 %v375, %v632
        %v634 = vpop.f32.mrb[0].mxu0
        %v635 = vpop.f32.mrb[0].mxu0
        %v636 = vadd.f32 %v375, %v635
        %v637 = vpop.f32.mrb[0].mxu0
        %638 = vmatprep.mubr.bf16.mxu0 0
        %639 = vmatmul.mubr.bf16.gmra.mrb[0].mxu0 %v391
        %v640 = vpop.f32.mrb[0].mxu0
        %v641 = vadd.f32 %v375, %v640
        %v642 = vpop.f32.mrb[0].mxu0
        %v643 = vpop.f32.mrb[0].mxu0
        %v644 = vadd.f32 %v375, %v643
        %v645 = vpop.f32.mrb[0].mxu0
        %646 = vmatprep.mubr.bf16.mxu0 0
        %647 = vmatmul.mubr.bf16.gmra.mrb[0].mxu0 %v394
        %v648 = vpop.f32.mrb[0].mxu0
        %v649 = vadd.f32 %v375, %v648
        %v650 = vpop.f32.mrb[0].mxu0
        %v651 = vpop.f32.mrb[0].mxu0
        %v652 = vadd.f32 %v375, %v651
        %v653 = vpop.f32.mrb[0].mxu0
        %654 = vmatprep.mubr.bf16.mxu0 0
        %655 = vmatmul.mubr.bf16.gmra.mrb[0].mxu0 %v397
        %v656 = vpop.f32.mrb[0].mxu0
        %v657 = vadd.f32 %v375, %v656
        %v658 = vpop.f32.mrb[0].mxu0
        %v659 = vpop.f32.mrb[0].mxu0
        %v660 = vadd.f32 %v375, %v659
        %v661 = vpop.f32.mrb[0].mxu0
        %662 = vmatprep.mubr.bf16.mxu0 0
        %663 = vmatmul.mubr.bf16.gmra.mrb[0].mxu0 %v400
        %v664 = vpop.f32.mrb[0].mxu0
        %v665 = vadd.f32 %v375, %v664
        %v666 = vpop.f32.mrb[0].mxu0
        %v667 = vpop.f32.mrb[0].mxu0
        %v668 = vadd.f32 %v375, %v667
        %v669 = vpop.f32.mrb[0].mxu0
        %670 = vmatprep.mubr.bf16.mxu0 0
        %671 = vmatmul.mubr.bf16.gmra.mrb[0].mxu0 %v403
        %v672 = vpop.f32.mrb[0].mxu0
        %v673 = vadd.f32 %v375, %v672
        %v674 = vpop.f32.mrb[0].mxu0
        %v675 = vpop.f32.mrb[0].mxu0
        %v676 = vadd.f32 %v375, %v675
        %v677 = vpop.f32.mrb[0].mxu0
        %678 = vmatprep.mubr.bf16.mxu0 0
        %679 = vmatmul.mubr.bf16.gmra.mrb[0].mxu0 %v406
        %v680 = vpop.f32.mrb[0].mxu0
        %v681 = vadd.f32 %v375, %v680
        %v682 = vpop.f32.mrb[0].mxu0
        %v683 = vpop.f32.mrb[0].mxu0
        %v684 = vadd.f32 %v375, %v683
        %v685 = vpop.f32.mrb[0].mxu0
        %686 = vmatprep.mubr.bf16.mxu0 0
        %687 = vmatmul.mubr.bf16.gmra.mrb[0].mxu0 %v409
        %v688 = vpop.f32.mrb[0].mxu0
        %v689 = vadd.f32 %v375, %v688
        %v690 = vpop.f32.mrb[0].mxu0
        %v691 = vpop.f32.mrb[0].mxu0
        %v692 = vadd.f32 %v375, %v691
        %v693 = vpop.f32.mrb[0].mxu0
        %694 = vmatprep.mubr.bf16.mxu0 0
        %695 = vmatmul.mubr.bf16.gmra.mrb[0].mxu0 %v412
        %v696 = vpop.f32.mrb[0].mxu0
        %v697 = vadd.f32 %v375, %v696
        %v698 = vpop.f32.mrb[0].mxu0
        %v699 = vpop.f32.mrb[0].mxu0
        %v700 = vadd.f32 %v375, %v699
        %v701 = vpop.f32.mrb[0].mxu0
        %702 = vmatprep.mubr.bf16.mxu0 0
        %703 = vmatmul.mubr.bf16.gmra.mrb[0].mxu0 %v415
        %v704 = vpop.f32.mrb[0].mxu0
        %v705 = vadd.f32 %v375, %v704
        %v706 = vpop.f32.mrb[0].mxu0
        %v707 = vpop.f32.mrb[0].mxu0
        %v708 = vadd.f32 %v375, %v707
        %v709 = vpop.f32.mrb[0].mxu0
        %710 = vmatprep.mubr.bf16.mxu0 0
        %711 = vmatmul.mubr.bf16.gmra.mrb[0].mxu0 %v418
        %v712 = vpop.f32.mrb[0].mxu0
        %v713 = vadd.f32 %v375, %v712
        %v714 = vpop.f32.mrb[0].mxu0
        %v715 = vpop.f32.mrb[0].mxu0
        %v716 = vadd.f32 %v375, %v715
        %v717 = vpop.f32.mrb[0].mxu0
        %718 = vmatprep.mubr.bf16.mxu0 0
        %719 = vmatmul.mubr.bf16.gmra.mrb[0].mxu0 %v421
        %v720 = vpop.f32.mrb[0].mxu0
        %v721 = vadd.f32 %v375, %v720
        %v722 = vpop.f32.mrb[0].mxu0
        %v723 = vpop.f32.mrb[0].mxu0
        %v724 = vadd.f32 %v375, %v723
        %v725 = vpop.f32.mrb[0].mxu0
        %726 = vmatprep.mubr.bf16.mxu0 0
        %727 = vmatmul.mubr.bf16.gmra.mrb[0].mxu0 %v424
        %v728 = vpop.f32.mrb[0].mxu0
        %v729 = vadd.f32 %v375, %v728
        %v730 = vpop.f32.mrb[0].mxu0
        %v731 = vpop.f32.mrb[0].mxu0
        %v732 = vadd.f32 %v375, %v731
        %v733 = vpop.f32.mrb[0].mxu0
        %734 = vmatprep.mubr.bf16.mxu0 0
        %735 = vmatmul.mubr.bf16.gmra.mrb[0].mxu0 %v427
        %v736 = vpop.f32.mrb[0].mxu0
        %v737 = vadd.f32 %v375, %v736
        %v738 = vpop.f32.mrb[0].mxu0
        %v739 = vpop.f32.mrb[0].mxu0
        %v740 = vadd.f32 %v375, %v739
        %v741 = vpop.f32.mrb[0].mxu0
        %742 = vmatprep.mubr.bf16.mxu0 0
        %743 = vmatmul.mubr.bf16.gmra.mrb[0].mxu0 %v430
        %v744 = vpop.f32.mrb[0].mxu0
        %v745 = vadd.f32 %v375, %v744
        %v746 = vpop.f32.mrb[0].mxu0
        %v747 = vpop.f32.mrb[0].mxu0
        %v748 = vadd.f32 %v375, %v747
        %v749 = vpop.f32.mrb[0].mxu0
        %750 = vmatprep.mubr.bf16.mxu0 0
        %751 = vmatmul.mubr.bf16.gmra.mrb[0].mxu0 %v433
        %v752 = vpop.f32.mrb[0].mxu0
        %v753 = vadd.f32 %v375, %v752
        %v754 = vpop.f32.mrb[0].mxu0
        %v755 = vpop.f32.mrb[0].mxu0
        %v756 = vadd.f32 %v375, %v755
        %v757 = vpop.f32.mrb[0].mxu0
        %758 = vmatprep.mubr.bf16.mxu0 0
        %759 = vmatmul.mubr.bf16.gmra.mrb[0].mxu0 %v436
        %v760 = vpop.f32.mrb[0].mxu0
        %v761 = vadd.f32 %v375, %v760
        %v762 = vpop.f32.mrb[0].mxu0
        %v763 = vpop.f32.mrb[0].mxu0
        %v764 = vadd.f32 %v375, %v763
        %v765 = vpop.f32.mrb[0].mxu0
        %766 = vmatprep.mubr.bf16.mxu0 0
        %767 = vmatmul.mubr.bf16.gmra.mrb[0].mxu0 %v439
        %v768 = vpop.f32.mrb[0].mxu0
        %v769 = vadd.f32 %v375, %v768
        %v770 = vpop.f32.mrb[0].mxu0
        %v771 = vpop.f32.mrb[0].mxu0
        %v772 = vadd.f32 %v375, %v771
        %v773 = vpop.f32.mrb[0].mxu0
        %774 = vmatprep.mubr.bf16.mxu0 0
        %775 = vmatmul.mubr.bf16.gmra.mrb[0].mxu0 %v442
        %v776 = vpop.f32.mrb[0].mxu0
        %v777 = vadd.f32 %v375, %v776
        %v778 = vpop.f32.mrb[0].mxu0
        %v779 = vpop.f32.mrb[0].mxu0
        %v780 = vadd.f32 %v375, %v779
        %v781 = vpop.f32.mrb[0].mxu0
        %782 = vmatprep.mubr.bf16.mxu0 0
        %783 = vmatmul.mubr.bf16.gmra.mrb[0].mxu0 %v445
        %v784 = vpop.f32.mrb[0].mxu0
        %v785 = vadd.f32 %v375, %v784
        %v786 = vpop.f32.mrb[0].mxu0
        %v787 = vpop.f32.mrb[0].mxu0
        %v788 = vadd.f32 %v375, %v787
        %v789 = vpop.f32.mrb[0].mxu0
        %790 = vmatprep.mubr.bf16.mxu0 0
        %791 = vmatmul.mubr.bf16.gmra.mrb[0].mxu0 %v448
        %v792 = vpop.f32.mrb[0].mxu0
        %v793 = vadd.f32 %v375, %v792
        %v794 = vpop.f32.mrb[0].mxu0
        %v795 = vpop.f32.mrb[0].mxu0
        %v796 = vadd.f32 %v375, %v795
        %v797 = vpop.f32.mrb[0].mxu0
        %798 = vmatprep.mubr.bf16.mxu0 0
        %799 = vmatmul.mubr.bf16.gmra.mrb[0].mxu0 %v451
        %v800 = vpop.f32.mrb[0].mxu0
        %v801 = vadd.f32 %v375, %v800
        %v802 = vpop.f32.mrb[0].mxu0
        %v803 = vpop.f32.mrb[0].mxu0
        %v804 = vadd.f32 %v375, %v803
        %v805 = vpop.f32.mrb[0].mxu0
        %806 = vmatprep.mubr.bf16.mxu0 0
        %807 = vmatmul.mubr.bf16.gmra.mrb[0].mxu0 %v454
        %v808 = vpop.f32.mrb[0].mxu0
        %v809 = vadd.f32 %v375, %v808
        %v810 = vpop.f32.mrb[0].mxu0
        %v811 = vpop.f32.mrb[0].mxu0
        %v812 = vadd.f32 %v375, %v811
        %v813 = vpop.f32.mrb[0].mxu0
        %814 = vmatprep.mubr.bf16.mxu0 0
        %815 = vmatmul.mubr.bf16.gmra.mrb[0].mxu0 %v457
        %v816 = vpop.f32.mrb[0].mxu0
        %v817 = vadd.f32 %v375, %v816
        %v818 = vpop.f32.mrb[0].mxu0
        %v819 = vpop.f32.mrb[0].mxu0
        %v820 = vadd.f32 %v375, %v819
        %v821 = vpop.f32.mrb[0].mxu0
        %822 = vmatprep.mubr.bf16.mxu0 0
        %823 = vmatmul.mubr.bf16.gmra.mrb[0].mxu0 %v460
        %v824 = vpop.f32.mrb[0].mxu0
        %v825 = vadd.f32 %v375, %v824
        %v826 = vpop.f32.mrb[0].mxu0
        %v827 = vpop.f32.mrb[0].mxu0
        %v828 = vadd.f32 %v375, %v827
        %v829 = vpop.f32.mrb[0].mxu0
        %830 = vmatprep.mubr.bf16.mxu0 0
        %831 = vmatmul.mubr.bf16.gmra.mrb[0].mxu0 %v463
        %v832 = vpop.f32.mrb[0].mxu0
        %v833 = vadd.f32 %v375, %v832
        %v834 = vpop.f32.mrb[0].mxu0
        %v835 = vpop.f32.mrb[0].mxu0
        %v836 = vadd.f32 %v375, %v835
        %v837 = vpop.f32.mrb[0].mxu0
        %838 = vmatprep.mubr.bf16.mxu0 0
        %839 = vmatmul.mubr.bf16.gmra.mrb[0].mxu0 %v466
        %v840 = vpop.f32.mrb[0].mxu0
        %v841 = vadd.f32 %v375, %v840
        %v842 = vpop.f32.mrb[0].mxu0
        %v843 = vpop.f32.mrb[0].mxu0
        %v844 = vadd.f32 %v375, %v843
        %v845 = vpop.f32.mrb[0].mxu0
        %846 = vmatprep.mubr.bf16.mxu0 0
        %847 = vmatmul.mubr.bf16.gmra.mrb[0].mxu0 %v469
        %v848 = vpop.f32.mrb[0].mxu0
        %v849 = vadd.f32 %v375, %v848
        %v850 = vpop.f32.mrb[0].mxu0
        %v851 = vpop.f32.mrb[0].mxu0
        %v852 = vadd.f32 %v375, %v851
        %v853 = vpop.f32.mrb[0].mxu0
        %854 = vmatprep.mubr.bf16.mxu0 0
        %855 = vmatmul.mubr.bf16.gmra.mrb[0].mxu0 %v472
        %v856 = vpop.f32.mrb[0].mxu0
        %v857 = vadd.f32 %v375, %v856
        %v858 = vpop.f32.mrb[0].mxu0
        %v859 = vpop.f32.mrb[0].mxu0
        %v860 = vadd.f32 %v375, %v859
        %v861 = vpop.f32.mrb[0].mxu0
        %862 = vmatprep.mubr.bf16.mxu0 0
        %863 = vmatmul.mubr.bf16.gmra.mrb[0].mxu0 %v475
        %v864 = vpop.f32.mrb[0].mxu0
        %v865 = vadd.f32 %v375, %v864
        %v866 = vpop.f32.mrb[0].mxu0
        %v867 = vpop.f32.mrb[0].mxu0
        %v868 = vadd.f32 %v375, %v867
        %v869 = vpop.f32.mrb[0].mxu0
        %870 = vmatprep.mubr.bf16.mxu0 0
        %871 = vmatmul.mubr.bf16.gmra.mrb[0].mxu0 %v478
        %v872 = vpop.f32.mrb[0].mxu0
        %v873 = vadd.f32 %v375, %v872
        %v874 = vpop.f32.mrb[0].mxu0
        %v875 = vpop.f32.mrb[0].mxu0
        %v876 = vadd.f32 %v375, %v875
        %v877 = vpop.f32.mrb[0].mxu0
        %878 = vmatprep.mubr.bf16.mxu0 0
        %879 = vmatmul.mubr.bf16.gmra.mrb[0].mxu0 %v481
        %v880 = vpop.f32.mrb[0].mxu0
        %v881 = vadd.f32 %v375, %v880
        %v882 = vpop.f32.mrb[0].mxu0
        %v883 = vpop.f32.mrb[0].mxu0
        %v884 = vadd.f32 %v375, %v883
        %v885 = vpop.f32.mrb[0].mxu0
        %886 = vmatprep.mubr.bf16.mxu0 0
        %887 = vmatmul.mubr.bf16.gmra.mrb[0].mxu0 %v484
        %v888 = vpop.f32.mrb[0].mxu0
        %v889 = vadd.f32 %v375, %v888
        %v890 = vpop.f32.mrb[0].mxu0
        %v891 = vpop.f32.mrb[0].mxu0
        %v892 = vadd.f32 %v375, %v891
        %v893 = vpop.f32.mrb[0].mxu0
        %894 = vmatprep.mubr.bf16.mxu0 0
        %895 = vmatmul.mubr.bf16.gmra.mrb[0].mxu0 %v487
        %v896 = vpop.f32.mrb[0].mxu0
        %v897 = vadd.f32 %v375, %v896
        %v898 = vpop.f32.mrb[0].mxu0
        %v899 = vpop.f32.mrb[0].mxu0
        %v900 = vadd.f32 %v375, %v899
        %v901 = vpop.f32.mrb[0].mxu0
        %902 = vmatprep.mubr.bf16.mxu0 0
        %903 = vmatmul.mubr.bf16.gmra.mrb[0].mxu0 %v490
        %v904 = vpop.f32.mrb[0].mxu0
        %v905 = vadd.f32 %v375, %v904
        %v906 = vpop.f32.mrb[0].mxu0
        %v907 = vpop.f32.mrb[0].mxu0
        %v908 = vadd.f32 %v375, %v907
        %v909 = vpop.f32.mrb[0].mxu0
        %910 = vmatprep.mubr.bf16.mxu0 0
        %911 = vmatmul.mubr.bf16.gmra.mrb[0].mxu0 %v493
        %v912 = vpop.f32.mrb[0].mxu0
        %v913 = vadd.f32 %v375, %v912
        %v914 = vpop.f32.mrb[0].mxu0
        %v915 = vpop.f32.mrb[0].mxu0
        %v916 = vadd.f32 %v375, %v915
        %v917 = vpop.f32.mrb[0].mxu0
        %918 = vmatprep.mubr.bf16.mxu0 0
        %919 = vmatmul.mubr.bf16.gmra.mrb[0].mxu0 %v496
        %v920 = vpop.f32.mrb[0].mxu0
        %v921 = vadd.f32 %v375, %v920
        %v922 = vpop.f32.mrb[0].mxu0
        %v923 = vpop.f32.mrb[0].mxu0
        %v924 = vadd.f32 %v375, %v923
        %v925 = vpop.f32.mrb[0].mxu0
        %926 = vmatprep.mubr.bf16.mxu0 0
        %927 = vmatmul.mubr.bf16.gmra.mrb[0].mxu0 %v499
        %v928 = vpop.f32.mrb[0].mxu0
        %v929 = vadd.f32 %v375, %v928
        %v930 = vpop.f32.mrb[0].mxu0
        %v931 = vpop.f32.mrb[0].mxu0
        %v932 = vadd.f32 %v375, %v931
        %v933 = vpop.f32.mrb[0].mxu0
        %934 = vmatprep.mubr.bf16.mxu0 0
        %935 = vmatmul.mubr.bf16.gmra.mrb[0].mxu0 %v502
        %v936 = vpop.f32.mrb[0].mxu0
        %v937 = vadd.f32 %v375, %v936
        %v938 = vpop.f32.mrb[0].mxu0
        %v939 = vpop.f32.mrb[0].mxu0
        %v940 = vadd.f32 %v375, %v939
        %v941 = vpop.f32.mrb[0].mxu0
        %942 = vmatprep.mubr.bf16.mxu0 0
        %943 = vmatmul.mubr.bf16.gmra.mrb[0].mxu0 %v505
        %v944 = vpop.f32.mrb[0].mxu0
        %v945 = vadd.f32 %v375, %v944
        %v946 = vpop.f32.mrb[0].mxu0
        %v947 = vpop.f32.mrb[0].mxu0
        %v948 = vadd.f32 %v375, %v947
        %v949 = vpop.f32.mrb[0].mxu0
        %950 = vmatprep.mubr.bf16.mxu0 0
        %951 = vmatmul.mubr.bf16.gmra.mrb[0].mxu0 %v508
        %v952 = vpop.f32.mrb[0].mxu0
        %v953 = vadd.f32 %v375, %v952
        %v954 = vpop.f32.mrb[0].mxu0
        %v955 = vpop.f32.mrb[0].mxu0
        %v956 = vadd.f32 %v375, %v955
        %v957 = vpop.f32.mrb[0].mxu0
        %958 = vmatprep.mubr.bf16.mxu0 0
        %959 = vmatmul.mubr.bf16.gmra.mrb[0].mxu0 %v511
        %v960 = vpop.f32.mrb[0].mxu0
        %v961 = vadd.f32 %v375, %v960
        %v962 = vpop.f32.mrb[0].mxu0
        %v963 = vpop.f32.mrb[0].mxu0
        %v964 = vadd.f32 %v375, %v963
        %v965 = vpop.f32.mrb[0].mxu0
        %966 = vmatprep.mubr.bf16.mxu0 0
        %967 = vmatmul.mubr.bf16.gmra.mrb[0].mxu0 %v514
        %v968 = vpop.f32.mrb[0].mxu0
        %v969 = vadd.f32 %v375, %v968
        %v970 = vpop.f32.mrb[0].mxu0
        %v971 = vpop.f32.mrb[0].mxu0
        %v972 = vadd.f32 %v375, %v971
        %v973 = vpop.f32.mrb[0].mxu0
        %974 = vmatprep.mubr.bf16.mxu0 0
        %975 = vmatmul.mubr.bf16.gmra.mrb[0].mxu0 %v517
        %v976 = vpop.f32.mrb[0].mxu0
        %v977 = vadd.f32 %v375, %v976
        %v978 = vpop.f32.mrb[0].mxu0
        %v979 = vpop.f32.mrb[0].mxu0
        %v980 = vadd.f32 %v375, %v979
        %v981 = vpop.f32.mrb[0].mxu0
        %982 = vmatprep.mubr.bf16.mxu0 0
        %983 = vmatmul.mubr.bf16.gmra.mrb[0].mxu0 %v520
        %v984 = vpop.f32.mrb[0].mxu0
        %v985 = vadd.f32 %v375, %v984
        %v986 = vpop.f32.mrb[0].mxu0
        %v987 = vpop.f32.mrb[0].mxu0
        %v988 = vadd.f32 %v375, %v987
        %v989 = vpop.f32.mrb[0].mxu0
        %990 = vmatprep.mubr.bf16.mxu0 0
        %991 = vmatmul.mubr.bf16.gmra.mrb[0].mxu0 %v523
        %v992 = vpop.f32.mrb[0].mxu0
        %v993 = vadd.f32 %v375, %v992
        %v994 = vpop.f32.mrb[0].mxu0
        %v995 = vpop.f32.mrb[0].mxu0
        %v996 = vadd.f32 %v375, %v995
        %v997 = vpop.f32.mrb[0].mxu0
        %998 = vmatprep.mubr.bf16.mxu0 0
        %999 = vmatmul.mubr.bf16.gmra.mrb[0].mxu0 %v526
        %v1000 = vpop.f32.mrb[0].mxu0
        %v1001 = vadd.f32 %v375, %v1000
        %v1002 = vpop.f32.mrb[0].mxu0
        %v1003 = vpop.f32.mrb[0].mxu0
        %v1004 = vadd.f32 %v375, %v1003
        %v1005 = vpop.f32.mrb[0].mxu0
        %1006 = vmatprep.mubr.bf16.mxu0 0
        %1007 = vmatmul.mubr.bf16.gmra.mrb[0].mxu0 %v529
        %v1008 = vpop.f32.mrb[0].mxu0
        %v1009 = vadd.f32 %v375, %v1008
        %v1010 = vpop.f32.mrb[0].mxu0
        %v1011 = vpop.f32.mrb[0].mxu0
        %v1012 = vadd.f32 %v375, %v1011
        %v1013 = vpop.f32.mrb[0].mxu0
        %1014 = vmatprep.mubr.bf16.mxu0 0
        %1015 = vmatmul.mubr.bf16.gmra.mrb[0].mxu0 %v532
        %v1016 = vpop.f32.mrb[0].mxu0
        %v1017 = vadd.f32 %v375, %v1016
        %v1018 = vpop.f32.mrb[0].mxu0
        %v1019 = vpop.f32.mrb[0].mxu0
        %v1020 = vadd.f32 %v375, %v1019
        %v1021 = vpop.f32.mrb[0].mxu0
        %1022 = vmatprep.mubr.bf16.mxu0 0
        %1023 = vmatmul.mubr.bf16.gmra.mrb[0].mxu0 %v535
        %v1024 = vpop.f32.mrb[0].mxu0
        %v1025 = vadd.f32 %v375, %v1024
        %v1026 = vpop.f32.mrb[0].mxu0
        %v1027 = vpop.f32.mrb[0].mxu0
        %v1028 = vadd.f32 %v375, %v1027
        %v1029 = vpop.f32.mrb[0].mxu0
        %1030 = vmatprep.mubr.bf16.mxu0 0
        %1031 = vmatmul.mubr.bf16.gmra.mrb[0].mxu0 %v538
        %v1032 = vpop.f32.mrb[0].mxu0
        %v1033 = vadd.f32 %v375, %v1032
        %v1034 = vpop.f32.mrb[0].mxu0
        %v1035 = vpop.f32.mrb[0].mxu0
        %v1036 = vadd.f32 %v375, %v1035
        %v1037 = vpop.f32.mrb[0].mxu0
        %1038 = vmatprep.mubr.bf16.mxu0 0
        %1039 = vmatmul.mubr.bf16.gmra.mrb[0].mxu0 %v541
        %v1040 = vpop.f32.mrb[0].mxu0
        %v1041 = vadd.f32 %v375, %v1040
        %v1042 = vpop.f32.mrb[0].mxu0
        %v1043 = vpop.f32.mrb[0].mxu0
        %v1044 = vadd.f32 %v375, %v1043
        %v1045 = vpop.f32.mrb[0].mxu0
        %1046 = vmatprep.mubr.bf16.mxu0 0
        %1047 = vmatmul.mubr.bf16.gmra.mrb[0].mxu0 %v544
        %v1048 = vpop.f32.mrb[0].mxu0
        %v1049 = vadd.f32 %v375, %v1048
        %v1050 = vpop.f32.mrb[0].mxu0
        %v1051 = vpop.f32.mrb[0].mxu0
        %v1052 = vadd.f32 %v375, %v1051
        %v1053 = vpop.f32.mrb[0].mxu0
        %1054 = vmatprep.mubr.bf16.mxu0 0
        %1055 = vmatmul.mubr.bf16.gmra.mrb[0].mxu0 %v547
        %v1056 = vpop.f32.mrb[0].mxu0
        %v1057 = vadd.f32 %v375, %v1056
        %v1058 = vpop.f32.mrb[0].mxu0
        %v1059 = vpop.f32.mrb[0].mxu0
        %v1060 = vadd.f32 %v375, %v1059
        %v1061 = vpop.f32.mrb[0].mxu0
        %1062 = vmatprep.mubr.bf16.mxu0 0
        %1063 = vmatmul.mubr.bf16.gmra.mrb[0].mxu0 %v550
        %v1064 = vpop.f32.mrb[0].mxu0
        %v1065 = vadd.f32 %v375, %v1064
        %v1066 = vpop.f32.mrb[0].mxu0
        %v1067 = vpop.f32.mrb[0].mxu0
        %v1068 = vadd.f32 %v375, %v1067
        %v1069 = vpop.f32.mrb[0].mxu0
        %1070 = vmatprep.mubr.bf16.mxu0 0
        %1071 = vmatmul.mubr.bf16.gmra.mrb[0].mxu0 %v553
        %v1072 = vpop.f32.mrb[0].mxu0
        %v1073 = vadd.f32 %v375, %v1072
        %v1074 = vpop.f32.mrb[0].mxu0
        %v1075 = vpop.f32.mrb[0].mxu0
        %v1076 = vadd.f32 %v375, %v1075
        %v1077 = vpop.f32.mrb[0].mxu0
        %1078 = vmatprep.mubr.bf16.mxu0 0
        %1079 = vmatmul.mubr.bf16.gmra.mrb[0].mxu0 %v556
        %v1080 = vpop.f32.mrb[0].mxu0
        %v1081 = vadd.f32 %v375, %v1080
        %v1082 = vpop.f32.mrb[0].mxu0
        %v1083 = vpop.f32.mrb[0].mxu0
        %v1084 = vadd.f32 %v375, %v1083
        %v1085 = vpop.f32.mrb[0].mxu0
        %1086 = vmatprep.mubr.bf16.mxu0 0
        %1087 = vmatmul.mubr.bf16.gmra.mrb[0].mxu0 %v559
        %v1088 = vpop.f32.mrb[0].mxu0
        %v1089 = vadd.f32 %v375, %v1088
        %v1090 = vpop.f32.mrb[0].mxu0
        %v1091 = vpop.f32.mrb[0].mxu0
        %v1092 = vadd.f32 %v375, %v1091
        %v1093 = vpop.f32.mrb[0].mxu0
        %1094 = vmatprep.mubr.bf16.mxu0 0
        %1095 = vmatmul.mubr.bf16.gmra.mrb[0].mxu0 %v562
        %v1096 = vpop.f32.mrb[0].mxu0
        %v1097 = vadd.f32 %v375, %v1096
        %v1098 = vpop.f32.mrb[0].mxu0
        %v1099 = vpop.f32.mrb[0].mxu0
        %v1100 = vadd.f32 %v375, %v1099
        %v1101 = vpop.f32.mrb[0].mxu0
        %1102 = vmatprep.mubr.bf16.mxu0 0
        %1103 = vmatmul.mubr.bf16.gmra.mrb[0].mxu0 %v565
        %v1104 = vpop.f32.mrb[0].mxu0
        %v1105 = vadd.f32 %v375, %v1104
        %v1106 = vpop.f32.mrb[0].mxu0
        %v1107 = vpop.f32.mrb[0].mxu0
        %v1108 = vadd.f32 %v375, %v1107
        %v1109 = vpop.f32.mrb[0].mxu0
        %1110 = vmatprep.mubr.bf16.mxu0 0
        %1111 = vmatmul.mubr.bf16.gmra.mrb[0].mxu0 %v568
        %v1112 = vpop.f32.mrb[0].mxu0
        %v1113 = vadd.f32 %v375, %v1112
        %v1114 = vpop.f32.mrb[0].mxu0
        %v1115 = vpop.f32.mrb[0].mxu0
        %v1116 = vadd.f32 %v375, %v1115
        %v1117 = vpop.f32.mrb[0].mxu0
        %1118 = vdwg.mxu0
        %v1119 = vmax.f32 %v609, 0.0
        %v1120 = vmax.f32 %v612, 0.0
        %v1121 = vmax.f32 %v617, 0.0
        %v1122 = vmax.f32 %v620, 0.0
        %v1123 = vmax.f32 %v625, 0.0
        %v1124 = vmax.f32 %v628, 0.0
        %v1125 = vmax.f32 %v633, 0.0
        %v1126 = vmax.f32 %v636, 0.0
        %v1127 = vmax.f32 %v641, 0.0
        %v1128 = vmax.f32 %v644, 0.0
        %v1129 = vmax.f32 %v649, 0.0
        %v1130 = vmax.f32 %v652, 0.0
        %v1131 = vmax.f32 %v657, 0.0
        %v1132 = vmax.f32 %v660, 0.0
        %v1133 = vmax.f32 %v665, 0.0
        %v1134 = vmax.f32 %v668, 0.0
        %v1135 = vmax.f32 %v673, 0.0
        %v1136 = vmax.f32 %v676, 0.0
        %v1137 = vmax.f32 %v681, 0.0
        %v1138 = vmax.f32 %v684, 0.0
        %v1139 = vmax.f32 %v689, 0.0
        %v1140 = vmax.f32 %v692, 0.0
        %v1141 = vmax.f32 %v697, 0.0
        %v1142 = vmax.f32 %v700, 0.0
        %v1143 = vmax.f32 %v705, 0.0
        %v1144 = vmax.f32 %v708, 0.0
        %v1145 = vmax.f32 %v713, 0.0
        %v1146 = vmax.f32 %v716, 0.0
        %v1147 = vmax.f32 %v721, 0.0
        %v1148 = vmax.f32 %v724, 0.0
        %v1149 = vmax.f32 %v729, 0.0
        %v1150 = vmax.f32 %v732, 0.0
        %v1151 = vmax.f32 %v737, 0.0
        %v1152 = vmax.f32 %v740, 0.0
        %v1153 = vmax.f32 %v745, 0.0
        %v1154 = vmax.f32 %v748, 0.0
        %v1155 = vmax.f32 %v753, 0.0
        %v1156 = vmax.f32 %v756, 0.0
        %v1157 = vmax.f32 %v761, 0.0
        %v1158 = vmax.f32 %v764, 0.0
        %v1159 = vmax.f32 %v769, 0.0
        %v1160 = vmax.f32 %v772, 0.0
        %v1161 = vmax.f32 %v777, 0.0
        %v1162 = vmax.f32 %v780, 0.0
        %v1163 = vmax.f32 %v785, 0.0
        %v1164 = vmax.f32 %v788, 0.0
        %v1165 = vmax.f32 %v793, 0.0
        %v1166 = vmax.f32 %v796, 0.0
        %v1167 = vmax.f32 %v801, 0.0
        %v1168 = vmax.f32 %v804, 0.0
        %v1169 = vmax.f32 %v809, 0.0
        %v1170 = vmax.f32 %v812, 0.0
        %v1171 = vmax.f32 %v817, 0.0
        %v1172 = vmax.f32 %v820, 0.0
        %v1173 = vmax.f32 %v825, 0.0
        %v1174 = vmax.f32 %v828, 0.0
        %v1175 = vmax.f32 %v833, 0.0
        %v1176 = vmax.f32 %v836, 0.0
        %v1177 = vmax.f32 %v841, 0.0
        %v1178 = vmax.f32 %v844, 0.0
        %v1179 = vmax.f32 %v849, 0.0
        %v1180 = vmax.f32 %v852, 0.0
        %v1181 = vmax.f32 %v857, 0.0
        %v1182 = vmax.f32 %v860, 0.0
        %v1183 = vmax.f32 %v865, 0.0
        %v1184 = vmax.f32 %v868, 0.0
        %v1185 = vmax.f32 %v873, 0.0
        %v1186 = vmax.f32 %v876, 0.0
        %v1187 = vmax.f32 %v881, 0.0
        %v1188 = vmax.f32 %v884, 0.0
        %v1189 = vmax.f32 %v889, 0.0
        %v1190 = vmax.f32 %v892, 0.0
        %v1191 = vmax.f32 %v897, 0.0
        %v1192 = vmax.f32 %v900, 0.0
        %v1193 = vmax.f32 %v905, 0.0
        %v1194 = vmax.f32 %v908, 0.0
        %v1195 = vmax.f32 %v913, 0.0
        %v1196 = vmax.f32 %v916, 0.0
        %v1197 = vmax.f32 %v921, 0.0
        %v1198 = vmax.f32 %v924, 0.0
        %v1199 = vmax.f32 %v929, 0.0
        %v1200 = vmax.f32 %v932, 0.0
        %v1201 = vmax.f32 %v937, 0.0
        %v1202 = vmax.f32 %v940, 0.0
        %v1203 = vmax.f32 %v945, 0.0
        %v1204 = vmax.f32 %v948, 0.0
        %v1205 = vmax.f32 %v953, 0.0
        %v1206 = vmax.f32 %v956, 0.0
        %v1207 = vmax.f32 %v961, 0.0
        %v1208 = vmax.f32 %v964, 0.0
        %v1209 = vmax.f32 %v969, 0.0
        %v1210 = vmax.f32 %v972, 0.0
        %v1211 = vmax.f32 %v977, 0.0
        %v1212 = vmax.f32 %v980, 0.0
        %v1213 = vmax.f32 %v985, 0.0
        %v1214 = vmax.f32 %v988, 0.0
        %v1215 = vmax.f32 %v993, 0.0
        %v1216 = vmax.f32 %v996, 0.0
        %v1217 = vmax.f32 %v1001, 0.0
        %v1218 = vmax.f32 %v1004, 0.0
        %v1219 = vmax.f32 %v1009, 0.0
        %v1220 = vmax.f32 %v1012, 0.0
        %v1221 = vmax.f32 %v1017, 0.0
        %v1222 = vmax.f32 %v1020, 0.0
        %v1223 = vmax.f32 %v1025, 0.0
        %v1224 = vmax.f32 %v1028, 0.0
        %v1225 = vmax.f32 %v1033, 0.0
        %v1226 = vmax.f32 %v1036, 0.0
        %v1227 = vmax.f32 %v1041, 0.0
        %v1228 = vmax.f32 %v1044, 0.0
        %v1229 = vmax.f32 %v1049, 0.0
        %v1230 = vmax.f32 %v1052, 0.0
        %v1231 = vmax.f32 %v1057, 0.0
        %v1232 = vmax.f32 %v1060, 0.0
        %v1233 = vmax.f32 %v1065, 0.0
        %v1234 = vmax.f32 %v1068, 0.0
        %v1235 = vmax.f32 %v1073, 0.0
        %v1236 = vmax.f32 %v1076, 0.0
        %v1237 = vmax.f32 %v1081, 0.0
        %v1238 = vmax.f32 %v1084, 0.0
        %v1239 = vmax.f32 %v1089, 0.0
        %v1240 = vmax.f32 %v1092, 0.0
        %v1241 = vmax.f32 %v1097, 0.0
        %v1242 = vmax.f32 %v1100, 0.0
        %v1243 = vmax.f32 %v1105, 0.0
        %v1244 = vmax.f32 %v1108, 0.0
        %v1245 = vmax.f32 %v1113, 0.0
        %v1246 = vmax.f32 %v1116, 0.0
        %1247 = vst [vmem:[%s166] sm:$0xff] %v1119
        %1248 = vst [vmem:[%s166 + $0x8] sm:$0xff] %v1120
        %1249 = vst [vmem:[%s166 + $0x10] sm:$0xff] %v1121
        %1250 = vst [vmem:[%s166 + $0x18] sm:$0xff] %v1122
        %1251 = vst [vmem:[%s166 + $0x20] sm:$0xff] %v1123
        %1252 = vst [vmem:[%s166 + $0x28] sm:$0xff] %v1124
        %1253 = vst [vmem:[%s166 + $0x30] sm:$0xff] %v1125
        %1254 = vst [vmem:[%s166 + $0x38] sm:$0xff] %v1126
        %1255 = vst [vmem:[%s166 + $0x40] sm:$0xff] %v1127
        %1256 = vst [vmem:[%s166 + $0x48] sm:$0xff] %v1128
        %1257 = vst [vmem:[%s166 + $0x50] sm:$0xff] %v1129
        %1258 = vst [vmem:[%s166 + $0x58] sm:$0xff] %v1130
        %1259 = vst [vmem:[%s166 + $0x60] sm:$0xff] %v1131
        %1260 = vst [vmem:[%s166 + $0x68] sm:$0xff] %v1132
        %1261 = vst [vmem:[%s166 + $0x70] sm:$0xff] %v1133
        %1262 = vst [vmem:[%s166 + $0x78] sm:$0xff] %v1134
        %1263 = vst [vmem:[%s166 + $0x80] sm:$0xff] %v1135
        %1264 = vst [vmem:[%s166 + $0x88] sm:$0xff] %v1136
        %1265 = vst [vmem:[%s166 + $0x90] sm:$0xff] %v1137
        %1266 = vst [vmem:[%s166 + $0x98] sm:$0xff] %v1138
        %1267 = vst [vmem:[%s166 + $0xa0] sm:$0xff] %v1139
        %1268 = vst [vmem:[%s166 + $0xa8] sm:$0xff] %v1140
        %1269 = vst [vmem:[%s166 + $0xb0] sm:$0xff] %v1141
        %1270 = vst [vmem:[%s166 + $0xb8] sm:$0xff] %v1142
        %1271 = vst [vmem:[%s166 + $0xc0] sm:$0xff] %v1143
        %1272 = vst [vmem:[%s166 + $0xc8] sm:$0xff] %v1144
        %1273 = vst [vmem:[%s166 + $0xd0] sm:$0xff] %v1145
        %1274 = vst [vmem:[%s166 + $0xd8] sm:$0xff] %v1146
        %1275 = vst [vmem:[%s166 + $0xe0] sm:$0xff] %v1147
        %1276 = vst [vmem:[%s166 + $0xe8] sm:$0xff] %v1148
        %1277 = vst [vmem:[%s166 + $0xf0] sm:$0xff] %v1149
        %1278 = vst [vmem:[%s166 + $0xf8] sm:$0xff] %v1150
        %1279 = vst [vmem:[%s166 + $0x100] sm:$0xff] %v1151
        %1280 = vst [vmem:[%s166 + $0x108] sm:$0xff] %v1152
        %1281 = vst [vmem:[%s166 + $0x110] sm:$0xff] %v1153
        %1282 = vst [vmem:[%s166 + $0x118] sm:$0xff] %v1154
        %1283 = vst [vmem:[%s166 + $0x120] sm:$0xff] %v1155
        %1284 = vst [vmem:[%s166 + $0x128] sm:$0xff] %v1156
        %1285 = vst [vmem:[%s166 + $0x130] sm:$0xff] %v1157
        %1286 = vst [vmem:[%s166 + $0x138] sm:$0xff] %v1158
        %1287 = vst [vmem:[%s166 + $0x140] sm:$0xff] %v1159
        %1288 = vst [vmem:[%s166 + $0x148] sm:$0xff] %v1160
        %1289 = vst [vmem:[%s166 + $0x150] sm:$0xff] %v1161
        %1290 = vst [vmem:[%s166 + $0x158] sm:$0xff] %v1162
        %1291 = vst [vmem:[%s166 + $0x160] sm:$0xff] %v1163
        %1292 = vst [vmem:[%s166 + $0x168] sm:$0xff] %v1164
        %1293 = vst [vmem:[%s166 + $0x170] sm:$0xff] %v1165
        %1294 = vst [vmem:[%s166 + $0x178] sm:$0xff] %v1166
        %1295 = vst [vmem:[%s166 + $0x180] sm:$0xff] %v1167
        %1296 = vst [vmem:[%s166 + $0x188] sm:$0xff] %v1168
        %1297 = vst [vmem:[%s166 + $0x190] sm:$0xff] %v1169
        %1298 = vst [vmem:[%s166 + $0x198] sm:$0xff] %v1170
        %1299 = vst [vmem:[%s166 + $0x1a0] sm:$0xff] %v1171
        %1300 = vst [vmem:[%s166 + $0x1a8] sm:$0xff] %v1172
        %1301 = vst [vmem:[%s166 + $0x1b0] sm:$0xff] %v1173
        %1302 = vst [vmem:[%s166 + $0x1b8] sm:$0xff] %v1174
        %1303 = vst [vmem:[%s166 + $0x1c0] sm:$0xff] %v1175
        %1304 = vst [vmem:[%s166 + $0x1c8] sm:$0xff] %v1176
        %1305 = vst [vmem:[%s166 + $0x1d0] sm:$0xff] %v1177
        %1306 = vst [vmem:[%s166 + $0x1d8] sm:$0xff] %v1178
        %1307 = vst [vmem:[%s166 + $0x1e0] sm:$0xff] %v1179
        %1308 = vst [vmem:[%s166 + $0x1e8] sm:$0xff] %v1180
        %1309 = vst [vmem:[%s166 + $0x1f0] sm:$0xff] %v1181
        %1310 = vst [vmem:[%s166 + $0x1f8] sm:$0xff] %v1182
        %1311 = vst [vmem:[%s166 + $0x200] sm:$0xff] %v1183
        %1312 = vst [vmem:[%s166 + $0x208] sm:$0xff] %v1184
        %1313 = vst [vmem:[%s166 + $0x210] sm:$0xff] %v1185
        %1314 = vst [vmem:[%s166 + $0x218] sm:$0xff] %v1186
        %1315 = vst [vmem:[%s166 + $0x220] sm:$0xff] %v1187
        %1316 = vst [vmem:[%s166 + $0x228] sm:$0xff] %v1188
        %1317 = vst [vmem:[%s166 + $0x230] sm:$0xff] %v1189
        %1318 = vst [vmem:[%s166 + $0x238] sm:$0xff] %v1190
        %1319 = vst [vmem:[%s166 + $0x240] sm:$0xff] %v1191
        %1320 = vst [vmem:[%s166 + $0x248] sm:$0xff] %v1192
        %1321 = vst [vmem:[%s166 + $0x250] sm:$0xff] %v1193
        %1322 = vst [vmem:[%s166 + $0x258] sm:$0xff] %v1194
        %1323 = vst [vmem:[%s166 + $0x260] sm:$0xff] %v1195
        %1324 = vst [vmem:[%s166 + $0x268] sm:$0xff] %v1196
        %1325 = vst [vmem:[%s166 + $0x270] sm:$0xff] %v1197
        %1326 = vst [vmem:[%s166 + $0x278] sm:$0xff] %v1198
        %1327 = vst [vmem:[%s166 + $0x280] sm:$0xff] %v1199
        %1328 = vst [vmem:[%s166 + $0x288] sm:$0xff] %v1200
        %1329 = vst [vmem:[%s166 + $0x290] sm:$0xff] %v1201
        %1330 = vst [vmem:[%s166 + $0x298] sm:$0xff] %v1202
        %1331 = vst [vmem:[%s166 + $0x2a0] sm:$0xff] %v1203
        %1332 = vst [vmem:[%s166 + $0x2a8] sm:$0xff] %v1204
        %1333 = vst [vmem:[%s166 + $0x2b0] sm:$0xff] %v1205
        %1334 = vst [vmem:[%s166 + $0x2b8] sm:$0xff] %v1206
        %1335 = vst [vmem:[%s166 + $0x2c0] sm:$0xff] %v1207
        %1336 = vst [vmem:[%s166 + $0x2c8] sm:$0xff] %v1208
        %1337 = vst [vmem:[%s166 + $0x2d0] sm:$0xff] %v1209
        %1338 = vst [vmem:[%s166 + $0x2d8] sm:$0xff] %v1210
        %1339 = vst [vmem:[%s166 + $0x2e0] sm:$0xff] %v1211
        %1340 = vst [vmem:[%s166 + $0x2e8] sm:$0xff] %v1212
        %1341 = vst [vmem:[%s166 + $0x2f0] sm:$0xff] %v1213
        %1342 = vst [vmem:[%s166 + $0x2f8] sm:$0xff] %v1214
        %1343 = vst [vmem:[%s166 + $0x300] sm:$0xff] %v1215
        %1344 = vst [vmem:[%s166 + $0x308] sm:$0xff] %v1216
        %1345 = vst [vmem:[%s166 + $0x310] sm:$0xff] %v1217
        %1346 = vst [vmem:[%s166 + $0x318] sm:$0xff] %v1218
        %1347 = vst [vmem:[%s166 + $0x320] sm:$0xff] %v1219
        %1348 = vst [vmem:[%s166 + $0x328] sm:$0xff] %v1220
        %1349 = vst [vmem:[%s166 + $0x330] sm:$0xff] %v1221
        %1350 = vst [vmem:[%s166 + $0x338] sm:$0xff] %v1222
        %1351 = vst [vmem:[%s166 + $0x340] sm:$0xff] %v1223
        %1352 = vst [vmem:[%s166 + $0x348] sm:$0xff] %v1224
        %1353 = vst [vmem:[%s166 + $0x350] sm:$0xff] %v1225
        %1354 = vst [vmem:[%s166 + $0x358] sm:$0xff] %v1226
        %1355 = vst [vmem:[%s166 + $0x360] sm:$0xff] %v1227
        %1356 = vst [vmem:[%s166 + $0x368] sm:$0xff] %v1228
        %1357 = vst [vmem:[%s166 + $0x370] sm:$0xff] %v1229
        %1358 = vst [vmem:[%s166 + $0x378] sm:$0xff] %v1230
        %1359 = vst [vmem:[%s166 + $0x380] sm:$0xff] %v1231
        %1360 = vst [vmem:[%s166 + $0x388] sm:$0xff] %v1232
        %1361 = vst [vmem:[%s166 + $0x390] sm:$0xff] %v1233
        %1362 = vst [vmem:[%s166 + $0x398] sm:$0xff] %v1234
        %1363 = vst [vmem:[%s166 + $0x3a0] sm:$0xff] %v1235
        %1364 = vst [vmem:[%s166 + $0x3a8] sm:$0xff] %v1236
        %1365 = vst [vmem:[%s166 + $0x3b0] sm:$0xff] %v1237
        %1366 = vst [vmem:[%s166 + $0x3b8] sm:$0xff] %v1238
        %1367 = vst [vmem:[%s166 + $0x3c0] sm:$0xff] %v1239
        %1368 = vst [vmem:[%s166 + $0x3c8] sm:$0xff] %v1240
        %1369 = vst [vmem:[%s166 + $0x3d0] sm:$0xff] %v1241
        %1370 = vst [vmem:[%s166 + $0x3d8] sm:$0xff] %v1242
        %1371 = vst [vmem:[%s166 + $0x3e0] sm:$0xff] %v1243
        %1372 = vst [vmem:[%s166 + $0x3e8] sm:$0xff] %v1244
        %1373 = vst [vmem:[%s166 + $0x3f0] sm:$0xff] %v1245
        %1374 = vst [vmem:[%s166 + $0x3f8] sm:$0xff] %v1246
        %s1375 = sand.u32 %s93, 1
        %s1376 = scalar_lea.sflag [#allocation3], %s1375
        %s1377 = sand.u32 %s93, 1
        %s1378 = smul.addr %s1377, 1024
        %s1379 = scalar_lea.vmem [#allocation2], %s1378
        // Predicated region
        $region33: #{tpu_custom_call.1} parent=31 // pred_check
          %p1380 = pneg %p103
        $region34: #{tpu_custom_call.1} parent=31 // pred_check_branch
          %1382 = sbr.rel (%p1380) target = $region36
        $region35: #{tpu_custom_call.1} parent=31 // pred_region
          %s1383 = smul.u32 4, %s17
          %s1385 = ssub.s32 16384, 16384
          %1386 = vsyncadd %s1376, %s1385
          %s1387 = smul.addr %s1383, 32
          %s1388 = smul.addr %s1387, 128
          %s1389 = scalar_lea.hbm %s3, %s1388
          %s1390 = sshll.u32 %s1379, 4
          %s1391 = int_to_ptr.vmem [resolvable:$true] %s1390
          %1396 = dma.vmem_to_hbm [thread:$0]  %s1391, 16384, %s1389, %s1376, 128, 128, 8
        $region36: #{tpu_custom_call.1} parent=31 // pred_fallthru
          _
      $region32: #{tpu_custom_call.1} parent=5 // pred_fallthru
        _
      %p1397 = scmp.le.s32.totalorder 2, %s12
      // Predicated region
      $region37: #{tpu_custom_call.1} parent=5 // pred_check
        %p1398 = pneg %p1397
      $region38: #{tpu_custom_call.1} parent=5 // pred_check_branch
        %1400 = sbr.rel (%p1398) target = $region40
      $region39: #{tpu_custom_call.1} parent=5 // pred_region
        %s1401 = ssub.s32 %s12, 2
        // Predicated region
        $region41: #{tpu_custom_call.1} parent=39 // pred_check
          %p1402 = pneg %p109
        $region42: #{tpu_custom_call.1} parent=39 // pred_check_branch
          %1404 = sbr.rel (%p1402) target = $region44
        $region43: #{tpu_custom_call.1} parent=39 // pred_region
          %s1405 = sand.u32 %s94, 1
          %s1406 = scalar_lea.sflag [#allocation3], %s1405
          %s1407 = sand.u32 %s94, 1
          %s1408 = smul.addr %s1407, 1024
          %s1409 = scalar_lea.vmem [#allocation2], %s1408
          %1410 = dma.done %s1406, 16384
        $region44: #{tpu_custom_call.1} parent=39 // pred_fallthru
          _
      $region40: #{tpu_custom_call.1} parent=5 // pred_fallthru
        _
    $region6: #{tpu_custom_call.1} parent=1 // loop_footer
      %s16 = sadd.s32 1, %s12
    $region7: #{tpu_custom_call.1} parent=1 // loop_footer_branch
      %11 = sbr.rel target = $region3
    $region8: #{tpu_custom_call.1} parent=1 // loop_exit
      _
    %1411 = vsyncpa [#allocation3], 1
    %s1412 = scalar_lea.sflag [#allocation3], 1
    %1413 = vsyncpa %s1412, 1

</llo_original>
